<compile_context>
chip_gen: v6e
topology: v6e:2x2x1
jax: 0.10.0
libtpu: 0.0.40
codegen_flags: <defaults>
</compile_context>

<pallas_src>
import functools
import math

import jax
import jax.numpy as jnp
from jax.experimental import pallas as pl
from jax.experimental.pallas import tpu as pltpu


def _siren_fused_kernel(x_ref, *refs, n_layers):
    """Fused SIREN MLP on one batch tile.

    x_ref : (tm, in_features)   native-layout input tile
    refs  : layer 0:        w0T (in_f, h0) f32, b0 (h0, 1) f32        [w0-folded]
            layers 1..L-2:  w_l (out_l, in_l) f32/bf16, b_l (out_l,1) [w0-folded]
            layer L-1:      wLT (h_last, out_f) f32/bf16, bL (1, out_f)
            o_ref (tm, out_features)
    """
    o_ref = refs[-1]
    wb = refs[:-1]
    f32 = jnp.float32

    x = x_ref[...].astype(f32)                                 # (tm, in_f)

    if n_layers == 1:
        # Degenerate SIREN: a single plain linear layer.
        wl = wb[0][...]
        bl = wb[1][...]                                        # (1, out_f)
        y = jnp.dot(x, wl.astype(f32), preferred_element_type=f32) + bl
        o_ref[...] = y.astype(o_ref.dtype)
        return

    # ---- layer 0 (sine, w0_initial folded): MXU matmul in (batch, feature)
    # orientation straight off the untransposed input, then one XLU transpose
    # into the lane-dense (feature, batch) orientation used by all hidden
    # layers.  Kept in f32 (rounding-sensitive folded weights).
    w0t = wb[0][...]                                           # (in_f, h0) f32
    b0 = wb[1][...]                                            # (h0, 1)    f32
    y = jnp.dot(x, w0t, preferred_element_type=f32)            # (tm, h0)
    h = jnp.sin(y.T + b0)                                      # (h0, tm) lane-dense

    # ---- hidden layers 1 .. L-2: fully lane-dense (batch on the 128 lanes),
    # MXU operands optionally bf16, f32 accumulation, f32 bias/sine.
    for l in range(1, n_layers - 1):
        w = wb[2 * l][...]                                     # (out_l, in_l)
        b = wb[2 * l + 1][...]                                 # (out_l, 1) f32
        h = jnp.sin(jnp.dot(w, h.astype(w.dtype),
                            preferred_element_type=f32) + b)   # (out_l, tm)

    # ---- last layer (plain linear): one XLU transpose back to the native
    # (batch, feature) orientation and matmul straight into the (tm, out_f)
    # output tile -- no wrapper-level output transpose.
    wl = wb[2 * (n_layers - 1)][...]                           # (h_last, out_f)
    bl = wb[2 * (n_layers - 1) + 1][...]                       # (1, out_f) f32
    y = jnp.dot(h.T.astype(wl.dtype), wl, preferred_element_type=f32) + bl
    o_ref[...] = y.astype(o_ref.dtype)


def siren_forward(x, params, *, tm=None, tm_max=2048, use_bf16_mxu=False):
    """Run the full SIREN MLP as one fused Pallas kernel.

    x       : (N, in_features) float32 -- same layout as the PyTorch module.
    params  : list of (w, b, w0_or_None) with w in PyTorch (out, in) layout.
    tm      : batch tile (multiple of 128). None -> auto: min(tm_max, batch),
              kept to >= 2 grid steps when possible so v7x's two TensorCores
              both get work.  Sweep tm_max=2048..8192 for huge coord grids.
    use_bf16_mxu : feed bf16 operands to the MXU for layers >= 1 (f32
              accumulation, f32 bias/sine).  Worth it on v6e/v7x; layer 0 is
              kept f32.
    """
    N, in_f = x.shape
    n_layers = len(params)
    out_f = params[-1][0].shape[0]
    sizes = [in_f] + [p[0].shape[0] for p in params]
    hid_max = max(sizes[1:])

    # ---- batch tile selection -------------------------------------------------
    if tm is None:
        n128 = -(-N // 128) * 128
        tm = min(tm_max, n128)
        if n128 // tm < 2 and n128 >= 256:       # keep >=2 steps for v7x's 2 TCs
            tm = max(128, -(-(n128 // 2) // 128) * 128)
    assert tm % 128 == 0 and tm > 0, "batch tile must be a positive multiple of 128"

    # ---- ragged batch: pad to a tile multiple, slice the result afterwards ----
    n_pad = -(-N // tm) * tm
    x_in = x if n_pad == N else jnp.pad(x, ((0, n_pad - N), (0, 0)))

    # ---- fold w0 into weights/biases once; set per-layer layouts/dtypes -------
    kernel_args = []
    for l, (w, b, w0) in enumerate(params):
        wf = (w if w0 is None else w0 * w).astype(jnp.float32)
        bf = (b if w0 is None else w0 * b).astype(jnp.float32)
        is_first = (l == 0) and (n_layers > 1)
        is_last = l == n_layers - 1
        if is_first:
            wf = wf.T                       # (in_f, h0); stays f32
            bf = bf.reshape(-1, 1)          # (h0, 1)
        elif is_last:
            wf = wf.T                       # (h_last, out_f)
            bf = bf.reshape(1, -1)          # (1, out_f)
            if use_bf16_mxu:
                wf = wf.astype(jnp.bfloat16)
        else:
            bf = bf.reshape(-1, 1)          # (out_l, 1)
            if use_bf16_mxu:
                wf = wf.astype(jnp.bfloat16)
        kernel_args += [wf, bf]

    # ---- specs: I/O tiled over the batch; weights fully VMEM-resident ---------
    # (constant (0,0) block index => Pallas does not re-copy them per step).
    in_specs = [pl.BlockSpec((tm, in_f), lambda i: (i, 0))]
    for a in kernel_args:
        in_specs.append(pl.BlockSpec(a.shape, lambda i: (0, 0)))
    out_specs = pl.BlockSpec((tm, out_f), lambda i: (i, 0))

    # ---- scoped-VMEM budget (padded-tile accounting, generous headroom) -------
    ceil_to = lambda a, m: -(-a // m) * m
    tile_bytes = lambda r, c: ceil_to(r, 8) * ceil_to(c, 128) * 4
    est = (2 * tile_bytes(tm, in_f) + 2 * tile_bytes(tm, out_f)
           + 2 * tile_bytes(tm, hid_max) + 4 * tile_bytes(hid_max, tm)
           + 2 * sum(tile_bytes(*a.shape) for a in kernel_args))
    vmem_limit = int(min(64 * 2 ** 20, max(32 * 2 ** 20, est + (8 << 20))))

    # ---- advisory cost estimate for XLA's scheduler ---------------------------
    flops = 2 * n_pad * sum(sizes[i] * sizes[i + 1] for i in range(n_layers))
    transcendentals = n_pad * sum(sizes[1:-1])
    bytes_accessed = (n_pad * (in_f + out_f) * 4
                      + sum(int(a.size) * a.dtype.itemsize for a in kernel_args))

    kernel = functools.partial(_siren_fused_kernel, n_layers=n_layers)
    out = pl.pallas_call(
        kernel,
        out_shape=jax.ShapeDtypeStruct((n_pad, out_f), x.dtype),
        grid=(n_pad // tm,),
        in_specs=in_specs,
        out_specs=out_specs,
        compiler_params=pltpu.CompilerParams(
            dimension_semantics=("parallel",),
            vmem_limit_bytes=vmem_limit,
        ),
        cost_estimate=pl.CostEstimate(
            flops=flops,
            transcendentals=transcendentals,
            bytes_accessed=bytes_accessed,
        ),
    )(x_in, *kernel_args)
    return out if n_pad == N else out[:N]


def init_siren_params(key, layer_sizes, w0=30.0, w0_initial=30.0):
    """Parameter init mirroring the PyTorch module (weights in (out, in) layout)."""
    params = []
    n_layers = len(layer_sizes) - 1
    keys = jax.random.split(key, 2 * n_layers)
    for i in range(n_layers):
        in_f = layer_sizes[i]
        out_f = layer_sizes[i + 1]
        is_last = i == n_layers - 1
        is_first = i == 0
        kw, kb = keys[2 * i], keys[2 * i + 1]
        if is_last:
            # plain nn.Linear default (kaiming-uniform a=sqrt(5) -> 1/sqrt(fan_in))
            w_bound = 1.0 / math.sqrt(in_f)
        elif is_first:
            w_bound = 1.0 / in_f
        else:
            w_bound = math.sqrt(6.0 / in_f) / w0
        b_bound = 1.0 / math.sqrt(in_f)  # nn.Linear default bias init
        w = jax.random.uniform(kw, (out_f, in_f), jnp.float32, -w_bound, w_bound)
        b = jax.random.uniform(kb, (out_f,), jnp.float32, -b_bound, b_bound)
        layer_w0 = None if is_last else (w0_initial if is_first else w0)
        params.append((w, b, layer_w0))
    return params


if __name__ == "__main__":
    key = jax.random.PRNGKey(0)
    k_x, k_p = jax.random.split(key)

    # Small SIREN: coords (dim 4) -> 32 -> 32 -> 8 outputs.
    layer_sizes = [4, 32, 32, 8]
    N = 256
    x = jax.random.uniform(k_x, (N, layer_sizes[0]), jnp.float32, -1.0, 1.0)
    params = init_siren_params(k_p, layer_sizes, w0=30.0, w0_initial=30.0)

    # Pure-JAX reference (faithful to PyTorch: y = x @ W^T + b; sin(w0 * y)).
    def ref_forward(xin):
        h = xin
        for (w, b, layer_w0) in params:
            h = h @ w.T + b
            if layer_w0 is not None:
                h = jnp.sin(layer_w0 * h)
        return h

    # 1) f32 path, batch a multiple of the tile (auto tm -> 128, grid of 2).
    out = jax.block_until_ready(siren_forward(x, params))
    ref = ref_forward(x)
    assert out.shape == (N, layer_sizes[-1])
    err = float(jnp.max(jnp.abs(out - ref)))
    assert err < 5e-4, f"f32 path max err {err}"

    # 2) ragged batch (exercises the padded last tile).
    Nr = 200
    out_r = jax.block_until_ready(siren_forward(x[:Nr], params))
    ref_r = ref_forward(x[:Nr])
    assert out_r.shape == (Nr, layer_sizes[-1])
    err_r = float(jnp.max(jnp.abs(out_r - ref_r)))
    assert err_r < 5e-4, f"ragged path max err {err_r}"

    # 3) bf16-on-MXU path (v6e/v7x fast path): f32 accumulation, loose tolerance.
    out_bf = jax.block_until_ready(siren_forward(x, params, use_bf16_mxu=True))
    err_bf = float(jnp.max(jnp.abs(out_bf - ref)))
    assert err_bf < 2e-1, f"bf16 path max err {err_bf}"

    print("KERNEL_OK")
</pallas_src>

<mosaic_0001>
module attributes {stable_mosaic.version = 11 : i64} {
  func.func @_siren_fused_kernel(%arg0: i32, %arg1: memref<128x4xf32, #tpu.memory_space<vmem>>, %arg2: memref<4x32xf32, #tpu.memory_space<vmem>>, %arg3: memref<32x1xf32, #tpu.memory_space<vmem>>, %arg4: memref<32x32xf32, #tpu.memory_space<vmem>>, %arg5: memref<32x1xf32, #tpu.memory_space<vmem>>, %arg6: memref<32x8xf32, #tpu.memory_space<vmem>>, %arg7: memref<1x8xf32, #tpu.memory_space<vmem>>, %arg8: memref<128x8xf32, #tpu.memory_space<vmem>>) attributes {dimension_semantics = [#tpu.dimension_semantics<parallel>], iteration_bounds = array<i64: 2>, scalar_prefetch = 0 : i64, scratch_operands = 0 : i64, tpu.core_type = #tpu.core_type<tc>, window_params = [{transform_indices = @transform_0, window_bounds = array<i64: 128, 4>}, {pipeline_mode = #tpu.pipeline_mode<synchronous>, transform_indices = @transform_1, window_bounds = array<i64: 4, 32>}, {pipeline_mode = #tpu.pipeline_mode<synchronous>, transform_indices = @transform_2, window_bounds = array<i64: 32, 1>}, {pipeline_mode = #tpu.pipeline_mode<synchronous>, transform_indices = @transform_3, window_bounds = array<i64: 32, 32>}, {pipeline_mode = #tpu.pipeline_mode<synchronous>, transform_indices = @transform_4, window_bounds = array<i64: 32, 1>}, {pipeline_mode = #tpu.pipeline_mode<synchronous>, transform_indices = @transform_5, window_bounds = array<i64: 32, 8>}, {pipeline_mode = #tpu.pipeline_mode<synchronous>, transform_indices = @transform_6, window_bounds = array<i64: 1, 8>}, {transform_indices = @transform_7, window_bounds = array<i64: 128, 8>}]} {
    %c0 = arith.constant 0 : index
    %c0_0 = arith.constant 0 : index
    %0 = vector.load %arg1[%c0, %c0_0] : memref<128x4xf32, #tpu.memory_space<vmem>>, vector<128x4xf32>
    %c0_1 = arith.constant 0 : index
    %c0_2 = arith.constant 0 : index
    %1 = vector.load %arg2[%c0_1, %c0_2] : memref<4x32xf32, #tpu.memory_space<vmem>>, vector<4x32xf32>
    %c0_3 = arith.constant 0 : index
    %c0_4 = arith.constant 0 : index
    %2 = vector.load %arg3[%c0_3, %c0_4] : memref<32x1xf32, #tpu.memory_space<vmem>>, vector<32x1xf32>
    %cst = arith.constant dense<0.000000e+00> : vector<128x32xf32>
    %3 = tpu.matmul %0, %1, %cst {dimension_numbers = #tpu.dot_dimension_numbers<[1], [0], [0], [1], [0, 0, 1, 1], [], []>} : vector<128x4xf32>, vector<4x32xf32>, vector<128x32xf32> -> vector<128x32xf32>
    %4 = tpu.transpose %3, [1, 0] : vector<128x32xf32> -> vector<32x128xf32>
    %5 = vector.broadcast %2 : vector<32x1xf32> to vector<32x128xf32>
    %6 = arith.addf %4, %5 : vector<32x128xf32>
    %7 = math.sin %6 : vector<32x128xf32>
    %c0_5 = arith.constant 0 : index
    %c0_6 = arith.constant 0 : index
    %8 = vector.load %arg4[%c0_5, %c0_6] : memref<32x32xf32, #tpu.memory_space<vmem>>, vector<32x32xf32>
    %c0_7 = arith.constant 0 : index
    %c0_8 = arith.constant 0 : index
    %9 = vector.load %arg5[%c0_7, %c0_8] : memref<32x1xf32, #tpu.memory_space<vmem>>, vector<32x1xf32>
    %cst_9 = arith.constant dense<0.000000e+00> : vector<32x128xf32>
    %10 = tpu.matmul %8, %7, %cst_9 {dimension_numbers = #tpu.dot_dimension_numbers<[1], [0], [0], [1], [0, 0, 1, 1], [], []>} : vector<32x32xf32>, vector<32x128xf32>, vector<32x128xf32> -> vector<32x128xf32>
    %11 = vector.broadcast %9 : vector<32x1xf32> to vector<32x128xf32>
    %12 = arith.addf %10, %11 : vector<32x128xf32>
    %13 = math.sin %12 : vector<32x128xf32>
    %c0_10 = arith.constant 0 : index
    %c0_11 = arith.constant 0 : index
    %14 = vector.load %arg6[%c0_10, %c0_11] : memref<32x8xf32, #tpu.memory_space<vmem>>, vector<32x8xf32>
    %c0_12 = arith.constant 0 : index
    %c0_13 = arith.constant 0 : index
    %15 = vector.load %arg7[%c0_12, %c0_13] : memref<1x8xf32, #tpu.memory_space<vmem>>, vector<1x8xf32>
    %16 = tpu.transpose %13, [1, 0] : vector<32x128xf32> -> vector<128x32xf32>
    %cst_14 = arith.constant dense<0.000000e+00> : vector<128x8xf32>
    %17 = tpu.matmul %16, %14, %cst_14 {dimension_numbers = #tpu.dot_dimension_numbers<[1], [0], [0], [1], [0, 0, 1, 1], [], []>} : vector<128x32xf32>, vector<32x8xf32>, vector<128x8xf32> -> vector<128x8xf32>
    %18 = vector.broadcast %15 : vector<1x8xf32> to vector<128x8xf32>
    %19 = arith.addf %17, %18 : vector<128x8xf32>
    %c0_15 = arith.constant 0 : index
    %c0_16 = arith.constant 0 : index
    %20 = vector.load %arg8[%c0_15, %c0_16] : memref<128x8xf32, #tpu.memory_space<vmem>>, vector<128x8xf32>
    tpu.vector_store %arg8[%c0_15, %c0_16], %19 {strides = array<i32>} : memref<128x8xf32, #tpu.memory_space<vmem>>, vector<128x8xf32>,
    return
  }
  func.func @transform_0(%arg0: i32) -> (i32, i32) {
    %c0_i32 = arith.constant 0 : i32
    %c0_i32_0 = arith.constant 0 : i32
    return %arg0, %c0_i32 : i32, i32
  }
  func.func @transform_1(%arg0: i32) -> (i32, i32) {
    %c0_i32 = arith.constant 0 : i32
    %c0_i32_0 = arith.constant 0 : i32
    %c0_i32_1 = arith.constant 0 : i32
    return %c0_i32, %c0_i32_0 : i32, i32
  }
  func.func @transform_2(%arg0: i32) -> (i32, i32) {
    %c0_i32 = arith.constant 0 : i32
    %c0_i32_0 = arith.constant 0 : i32
    %c0_i32_1 = arith.constant 0 : i32
    return %c0_i32, %c0_i32_0 : i32, i32
  }
  func.func @transform_3(%arg0: i32) -> (i32, i32) {
    %c0_i32 = arith.constant 0 : i32
    %c0_i32_0 = arith.constant 0 : i32
    %c0_i32_1 = arith.constant 0 : i32
    return %c0_i32, %c0_i32_0 : i32, i32
  }
  func.func @transform_4(%arg0: i32) -> (i32, i32) {
    %c0_i32 = arith.constant 0 : i32
    %c0_i32_0 = arith.constant 0 : i32
    %c0_i32_1 = arith.constant 0 : i32
    return %c0_i32, %c0_i32_0 : i32, i32
  }
  func.func @transform_5(%arg0: i32) -> (i32, i32) {
    %c0_i32 = arith.constant 0 : i32
    %c0_i32_0 = arith.constant 0 : i32
    %c0_i32_1 = arith.constant 0 : i32
    return %c0_i32, %c0_i32_0 : i32, i32
  }
  func.func @transform_6(%arg0: i32) -> (i32, i32) {
    %c0_i32 = arith.constant 0 : i32
    %c0_i32_0 = arith.constant 0 : i32
    %c0_i32_1 = arith.constant 0 : i32
    return %c0_i32, %c0_i32_0 : i32, i32
  }
  func.func @transform_7(%arg0: i32) -> (i32, i32) {
    %c0_i32 = arith.constant 0 : i32
    %c0_i32_0 = arith.constant 0 : i32
    return %arg0, %c0_i32 : i32, i32
  }
}

</mosaic_0001>

<llo_original>
// kernel: tpu_custom_call.1
$region0: #{tpu_custom_call.1}
  #allocation0 [shape = 'u32[]', space=smem, size = 0x4, offset = 0x4, fixed_abs, tag = 'smem constant byte address 0x4 - core index']
  #allocation1 [shape = 'u32[144,128]{1,0:T(1,128)}', space=vmem, size = 0x12000, scoped, tag = 'internal scratch']
  %s0 = inlined_call_operand.vmem [shape: f32[256,4], index: 0, kind: input, shape index: {}]
  %s1 = inlined_call_operand.vmem [shape: f32[4,32], index: 1, kind: input, shape index: {}]
  %s2 = inlined_call_operand.vmem [shape: f32[32,1], index: 2, kind: input, shape index: {}]
  %s3 = inlined_call_operand.vmem [shape: f32[32,32], index: 3, kind: input, shape index: {}]
  %s4 = inlined_call_operand.vmem [shape: f32[32,1], index: 4, kind: input, shape index: {}]
  %s5 = inlined_call_operand.vmem [shape: f32[32,8], index: 5, kind: input, shape index: {}]
  %s6 = inlined_call_operand.vmem [shape: f32[1,8], index: 6, kind: input, shape index: {}]
  %s7 = inlined_call_operand.vmem [shape: f32[256,8], index: 7, kind: output, shape index: {}]
  %s8 = sld [smem:[#allocation0]]
  $region61: #{tpu_custom_call.1} parent=0
    _
  %s10 = ssub.s32 1, %s8
  %s11 = scalar_select 0, %s10, %s8
  loop: start=0, step=1, limit=4
  $region2: #{tpu_custom_call.1} parent=0 // loop_pre_header
    _
  $region3: #{tpu_custom_call.1} parent=0 // loop_header
    %s13 = sphi 0, %s17
    %p14 = scmp.ge.s32.totalorder %s13, 4
    %s23 = sphi 0, %s25
    %s26 = sphi 0, %s23
    %s27 = sphi 0, %s26
    %s43 = sphi 0, %s27
    %s47 = sphi 0, %s47
    %s49 = sphi 0, %s47
    %s50 = sphi 0, %s49
    %s64 = sphi 0, %s50
    %s68 = sphi 0, %s68
    %s70 = sphi 0, %s68
    %s71 = sphi 0, %s70
    %s85 = sphi 0, %s71
    %s89 = sphi 0, %s89
    %s91 = sphi 0, %s89
    %s92 = sphi 0, %s91
    %s106 = sphi 0, %s92
    %s110 = sphi 0, %s110
    %s112 = sphi 0, %s110
    %s113 = sphi 0, %s112
    %s127 = sphi 0, %s113
    %s131 = sphi 0, %s131
    %s133 = sphi 0, %s131
    %s134 = sphi 0, %s133
    %s148 = sphi 0, %s134
    %s152 = sphi 0, %s152
    %s154 = sphi 0, %s152
    %s155 = sphi 0, %s154
    %s169 = sphi 0, %s155
    %s175 = sphi 0, %s177
    %s178 = sphi 0, %s175
    %s179 = sphi 0, %s178
    %s195 = sphi 0, %s179
  $region4: #{tpu_custom_call.1} parent=0 // loop_header_branch
    %16 = sbr.rel (%p14) target = $region8
  $region5: #{tpu_custom_call.1} parent=0 // loop_body
    %s18 = ssub.s32 %s13, 1
    %s19 = ssub.s32 %s13, 2
    %s20 = sadd.s32 %s13, 1
    %s21 = ssub.s32 %s13, %s20
    %p22 = scmp.eq.s32.totalorder %s21, 0
    %s24 = sadd.s32 %s23, 1
    %s25 = scalar_select %p22, %s23, %s24
    %p28 = pneg %p22
    %p29 = scmp.eq.s32.totalorder %s13, 1
    %p30 = por %p28, %p29
    %p31 = scmp.ne.s32.totalorder %s23, %s26
    %p32 = scmp.eq.s32.totalorder %s13, 0
    %p33 = por %p31, %p32
    %p34 = scmp.ne.s32.totalorder %s23, %s26
    %p35 = scmp.eq.s32.totalorder %s18, 1
    %p36 = por %p34, %p35
    %p37 = scmp.ne.s32.totalorder %s26, %s27
    %p38 = scmp.eq.s32.totalorder %s18, 0
    %p39 = por %p37, %p38
    %p40 = scmp.ne.s32.totalorder %s26, %s27
    %p41 = scmp.eq.s32.totalorder %s19, 1
    %p42 = por %p40, %p41
    %p44 = scmp.ne.s32.totalorder %s27, %s43
    %p45 = scmp.eq.s32.totalorder %s19, 0
    %p46 = por %p44, %p45
    %s48 = sadd.s32 %s47, 1
    %p51 = scmp.eq.s32.totalorder %s13, 1
    %p52 = scmp.ne.s32.totalorder %s47, %s49
    %p53 = scmp.eq.s32.totalorder %s13, 0
    %p54 = por %p52, %p53
    %p55 = scmp.ne.s32.totalorder %s47, %s49
    %p56 = scmp.eq.s32.totalorder %s18, 1
    %p57 = por %p55, %p56
    %p58 = scmp.ne.s32.totalorder %s49, %s50
    %p59 = scmp.eq.s32.totalorder %s18, 0
    %p60 = por %p58, %p59
    %p61 = scmp.ne.s32.totalorder %s49, %s50
    %p62 = scmp.eq.s32.totalorder %s19, 1
    %p63 = por %p61, %p62
    %p65 = scmp.ne.s32.totalorder %s50, %s64
    %p66 = scmp.eq.s32.totalorder %s19, 0
    %p67 = por %p65, %p66
    %s69 = sadd.s32 %s68, 1
    %p72 = scmp.eq.s32.totalorder %s13, 1
    %p73 = scmp.ne.s32.totalorder %s68, %s70
    %p74 = scmp.eq.s32.totalorder %s13, 0
    %p75 = por %p73, %p74
    %p76 = scmp.ne.s32.totalorder %s68, %s70
    %p77 = scmp.eq.s32.totalorder %s18, 1
    %p78 = por %p76, %p77
    %p79 = scmp.ne.s32.totalorder %s70, %s71
    %p80 = scmp.eq.s32.totalorder %s18, 0
    %p81 = por %p79, %p80
    %p82 = scmp.ne.s32.totalorder %s70, %s71
    %p83 = scmp.eq.s32.totalorder %s19, 1
    %p84 = por %p82, %p83
    %p86 = scmp.ne.s32.totalorder %s71, %s85
    %p87 = scmp.eq.s32.totalorder %s19, 0
    %p88 = por %p86, %p87
    %s90 = sadd.s32 %s89, 1
    %p93 = scmp.eq.s32.totalorder %s13, 1
    %p94 = scmp.ne.s32.totalorder %s89, %s91
    %p95 = scmp.eq.s32.totalorder %s13, 0
    %p96 = por %p94, %p95
    %p97 = scmp.ne.s32.totalorder %s89, %s91
    %p98 = scmp.eq.s32.totalorder %s18, 1
    %p99 = por %p97, %p98
    %p100 = scmp.ne.s32.totalorder %s91, %s92
    %p101 = scmp.eq.s32.totalorder %s18, 0
    %p102 = por %p100, %p101
    %p103 = scmp.ne.s32.totalorder %s91, %s92
    %p104 = scmp.eq.s32.totalorder %s19, 1
    %p105 = por %p103, %p104
    %p107 = scmp.ne.s32.totalorder %s92, %s106
    %p108 = scmp.eq.s32.totalorder %s19, 0
    %p109 = por %p107, %p108
    %s111 = sadd.s32 %s110, 1
    %p114 = scmp.eq.s32.totalorder %s13, 1
    %p115 = scmp.ne.s32.totalorder %s110, %s112
    %p116 = scmp.eq.s32.totalorder %s13, 0
    %p117 = por %p115, %p116
    %p118 = scmp.ne.s32.totalorder %s110, %s112
    %p119 = scmp.eq.s32.totalorder %s18, 1
    %p120 = por %p118, %p119
    %p121 = scmp.ne.s32.totalorder %s112, %s113
    %p122 = scmp.eq.s32.totalorder %s18, 0
    %p123 = por %p121, %p122
    %p124 = scmp.ne.s32.totalorder %s112, %s113
    %p125 = scmp.eq.s32.totalorder %s19, 1
    %p126 = por %p124, %p125
    %p128 = scmp.ne.s32.totalorder %s113, %s127
    %p129 = scmp.eq.s32.totalorder %s19, 0
    %p130 = por %p128, %p129
    %s132 = sadd.s32 %s131, 1
    %p135 = scmp.eq.s32.totalorder %s13, 1
    %p136 = scmp.ne.s32.totalorder %s131, %s133
    %p137 = scmp.eq.s32.totalorder %s13, 0
    %p138 = por %p136, %p137
    %p139 = scmp.ne.s32.totalorder %s131, %s133
    %p140 = scmp.eq.s32.totalorder %s18, 1
    %p141 = por %p139, %p140
    %p142 = scmp.ne.s32.totalorder %s133, %s134
    %p143 = scmp.eq.s32.totalorder %s18, 0
    %p144 = por %p142, %p143
    %p145 = scmp.ne.s32.totalorder %s133, %s134
    %p146 = scmp.eq.s32.totalorder %s19, 1
    %p147 = por %p145, %p146
    %p149 = scmp.ne.s32.totalorder %s134, %s148
    %p150 = scmp.eq.s32.totalorder %s19, 0
    %p151 = por %p149, %p150
    %s153 = sadd.s32 %s152, 1
    %p156 = scmp.eq.s32.totalorder %s13, 1
    %p157 = scmp.ne.s32.totalorder %s152, %s154
    %p158 = scmp.eq.s32.totalorder %s13, 0
    %p159 = por %p157, %p158
    %p160 = scmp.ne.s32.totalorder %s152, %s154
    %p161 = scmp.eq.s32.totalorder %s18, 1
    %p162 = por %p160, %p161
    %p163 = scmp.ne.s32.totalorder %s154, %s155
    %p164 = scmp.eq.s32.totalorder %s18, 0
    %p165 = por %p163, %p164
    %p166 = scmp.ne.s32.totalorder %s154, %s155
    %p167 = scmp.eq.s32.totalorder %s19, 1
    %p168 = por %p166, %p167
    %p170 = scmp.ne.s32.totalorder %s155, %s169
    %p171 = scmp.eq.s32.totalorder %s19, 0
    %p172 = por %p170, %p171
    %s173 = ssub.s32 %s13, %s20
    %p174 = scmp.eq.s32.totalorder %s173, 0
    %s176 = sadd.s32 %s175, 1
    %s177 = scalar_select %p174, %s175, %s176
    %p180 = pneg %p174
    %p181 = scmp.eq.s32.totalorder %s13, 1
    %p182 = por %p180, %p181
    %p183 = scmp.ne.s32.totalorder %s175, %s178
    %p184 = scmp.eq.s32.totalorder %s13, 0
    %p185 = por %p183, %p184
    %p186 = scmp.ne.s32.totalorder %s175, %s178
    %p187 = scmp.eq.s32.totalorder %s18, 1
    %p188 = por %p186, %p187
    %p189 = scmp.ne.s32.totalorder %s178, %s179
    %p190 = scmp.eq.s32.totalorder %s18, 0
    %p191 = por %p189, %p190
    %p192 = scmp.ne.s32.totalorder %s178, %s179
    %p193 = scmp.eq.s32.totalorder %s19, 1
    %p194 = por %p192, %p193
    %p196 = scmp.ne.s32.totalorder %s179, %s195
    %p197 = scmp.eq.s32.totalorder %s19, 0
    %p198 = por %p196, %p197
    %p199 = scmp.le.s32.totalorder 1, %s13
    %p200 = scmp.lt.s32.totalorder %s13, 3
    %p201 = pnand %p199, %p200
    %p202 = pneg %p201
    // Predicated region
    $region9: #{tpu_custom_call.1} parent=5 // pred_check
      _
    $region10: #{tpu_custom_call.1} parent=5 // pred_check_branch
      %204 = sbr.rel (%p201) target = $region12
    $region11: #{tpu_custom_call.1} parent=5 // pred_region
      %s205 = ssub.s32 %s13, 1
      // Predicated region
      $region13: #{tpu_custom_call.1} parent=11 // pred_check
        %p206 = pneg %p60
      $region14: #{tpu_custom_call.1} parent=11 // pred_check_branch
        %208 = sbr.rel (%p206) target = $region16
      $region15: #{tpu_custom_call.1} parent=11 // pred_region
        _
      $region16: #{tpu_custom_call.1} parent=11 // pred_fallthru
        _
      // Predicated region
      $region17: #{tpu_custom_call.1} parent=11 // pred_check
        %p209 = pneg %p81
      $region18: #{tpu_custom_call.1} parent=11 // pred_check_branch
        %211 = sbr.rel (%p209) target = $region20
      $region19: #{tpu_custom_call.1} parent=11 // pred_region
        _
      $region20: #{tpu_custom_call.1} parent=11 // pred_fallthru
        _
      // Predicated region
      $region21: #{tpu_custom_call.1} parent=11 // pred_check
        %p212 = pneg %p102
      $region22: #{tpu_custom_call.1} parent=11 // pred_check_branch
        %214 = sbr.rel (%p212) target = $region24
      $region23: #{tpu_custom_call.1} parent=11 // pred_region
        _
      $region24: #{tpu_custom_call.1} parent=11 // pred_fallthru
        _
      // Predicated region
      $region25: #{tpu_custom_call.1} parent=11 // pred_check
        %p215 = pneg %p123
      $region26: #{tpu_custom_call.1} parent=11 // pred_check_branch
        %217 = sbr.rel (%p215) target = $region28
      $region27: #{tpu_custom_call.1} parent=11 // pred_region
        _
      $region28: #{tpu_custom_call.1} parent=11 // pred_fallthru
        _
      // Predicated region
      $region29: #{tpu_custom_call.1} parent=11 // pred_check
        %p218 = pneg %p144
      $region30: #{tpu_custom_call.1} parent=11 // pred_check_branch
        %220 = sbr.rel (%p218) target = $region32
      $region31: #{tpu_custom_call.1} parent=11 // pred_region
        _
      $region32: #{tpu_custom_call.1} parent=11 // pred_fallthru
        _
      // Predicated region
      $region33: #{tpu_custom_call.1} parent=11 // pred_check
        %p221 = pneg %p165
      $region34: #{tpu_custom_call.1} parent=11 // pred_check_branch
        %223 = sbr.rel (%p221) target = $region36
      $region35: #{tpu_custom_call.1} parent=11 // pred_region
        _
      $region36: #{tpu_custom_call.1} parent=11 // pred_fallthru
        _
    $region12: #{tpu_custom_call.1} parent=5 // pred_fallthru
      _
    %p224 = scmp.lt.s32.totalorder %s13, 2
    // Predicated region
    $region37: #{tpu_custom_call.1} parent=5 // pred_check
      %p225 = pneg %p224
    $region38: #{tpu_custom_call.1} parent=5 // pred_check_branch
      %227 = sbr.rel (%p225) target = $region40
    $region39: #{tpu_custom_call.1} parent=5 // pred_region
      // Predicated region
      $region41: #{tpu_custom_call.1} parent=39 // pred_check
        %p228 = pneg %p33
      $region42: #{tpu_custom_call.1} parent=39 // pred_check_branch
        %230 = sbr.rel (%p228) target = $region44
      $region43: #{tpu_custom_call.1} parent=39 // pred_region
        %s231 = smul.u32 16, %s13
        %p232 = scmp.lt.s32.totalorder %s231, 31
        %s233 = scalar_select %p232, %s231, 31
        %s234 = smul.addr %s233, 8
        %s235 = scalar_lea.vmem %s0, %s234
        %s236 = smul.u32 16, %s13
      $region44: #{tpu_custom_call.1} parent=39 // pred_fallthru
        _
    $region40: #{tpu_custom_call.1} parent=5 // pred_fallthru
      _
    %p237 = scmp.le.s32.totalorder 1, %s13
    %p238 = scmp.lt.s32.totalorder %s13, 3
    %p239 = pnand %p237, %p238
    %p240 = pneg %p239
    // Predicated region
    $region45: #{tpu_custom_call.1} parent=5 // pred_check
      _
    $region46: #{tpu_custom_call.1} parent=5 // pred_check_branch
      %242 = sbr.rel (%p239) target = $region48
    $region47: #{tpu_custom_call.1} parent=5 // pred_region
      %s243 = ssub.s32 %s13, 1
      %s244 = smul.u32 16, %s18
      %p245 = scmp.lt.s32.totalorder %s244, 31
      %s246 = scalar_select %p245, %s244, 31
      %s247 = smul.addr %s246, 8
      %s248 = scalar_lea.vmem %s0, %s247
      %p249 = pneg %p39
      %p250 = pneg %p36
      %p251 = pneg %p60
      %p252 = pneg %p57
      %p253 = pneg %p81
      %p254 = pneg %p78
      %p255 = pneg %p102
      %p256 = pneg %p99
      %p257 = pneg %p123
      %p258 = pneg %p120
      %p259 = pneg %p144
      %p260 = pneg %p141
      %p261 = pneg %p165
      %p262 = pneg %p162
      %p263 = pneg %p191
      %p264 = pneg %p188
      %s265 = smul.u32 16, %s18
      %p266 = scmp.lt.s32.totalorder %s265, 31
      %s267 = scalar_select %p266, %s265, 31
      %s268 = smul.addr %s267, 8
      %s269 = scalar_lea.vmem %s7, %s268
      %s270 = smul.u32 16, %s18
      %p271 = scmp.lt.s32.totalorder %s270, 31
      %s272 = scalar_select %p271, %s270, 31
      %s273 = smul.addr %s272, 8
      %s274 = scalar_lea.vmem %s0, %s273
      %s275 = smul.u32 16, %s18
      %s276 = smul.u32 16, %s18
      %p277 = scmp.lt.s32.totalorder %s276, 31
      %s278 = scalar_select %p277, %s276, 31
      %s279 = smul.addr %s278, 8
      %s280 = scalar_lea.vmem %s7, %s279
      %s281 = smul.u32 16, %s18
      %v282 = vld [vmem:[%s274] sm:$0xff]
      %v283 = vld [vmem:[%s274 + $0x8] sm:$0xff]
      %v284 = vld [vmem:[%s274 + $0x10] sm:$0xff]
      %v285 = vld [vmem:[%s274 + $0x18] sm:$0xff]
      %v286 = vld [vmem:[%s274 + $0x20] sm:$0xff]
      %v287 = vld [vmem:[%s274 + $0x28] sm:$0xff]
      %v288 = vld [vmem:[%s274 + $0x30] sm:$0xff]
      %v289 = vld [vmem:[%s274 + $0x38] sm:$0xff]
      %v290 = vld [vmem:[%s274 + $0x40] sm:$0xff]
      %v291 = vld [vmem:[%s274 + $0x48] sm:$0xff]
      %v292 = vld [vmem:[%s274 + $0x50] sm:$0xff]
      %v293 = vld [vmem:[%s274 + $0x58] sm:$0xff]
      %v294 = vld [vmem:[%s274 + $0x60] sm:$0xff]
      %v295 = vld [vmem:[%s274 + $0x68] sm:$0xff]
      %v296 = vld [vmem:[%s274 + $0x70] sm:$0xff]
      %v297 = vld [vmem:[%s274 + $0x78] sm:$0xff]
      %v298 = vld [vmem:[%s1] sm:$0xf]
      %v299 = vld [vmem:[%s2] sm:$0xff]
      %v300 = vld [vmem:[%s2 + $0x8] sm:$0xff]
      %v301 = vld [vmem:[%s2 + $0x10] sm:$0xff]
      %v302 = vld [vmem:[%s2 + $0x18] sm:$0xff]
      %vm303 = vcmask 31744
      %v305 = vsel %vm303, %v282, 0
      %v308 = vsel %vm303, %v283, 0
      %v311 = vsel %vm303, %v284, 0
      %v314 = vsel %vm303, %v285, 0
      %v317 = vsel %vm303, %v286, 0
      %v320 = vsel %vm303, %v287, 0
      %v323 = vsel %vm303, %v288, 0
      %v326 = vsel %vm303, %v289, 0
      %v329 = vsel %vm303, %v290, 0
      %v332 = vsel %vm303, %v291, 0
      %v335 = vsel %vm303, %v292, 0
      %v338 = vsel %vm303, %v293, 0
      %v341 = vsel %vm303, %v294, 0
      %v344 = vsel %vm303, %v295, 0
      %v347 = vsel %vm303, %v296, 0
      %v350 = vsel %vm303, %v297, 0
      %vm352 = vcmask 1043456
      %v354 = vsel %vm352, %v298, 0
      %356 = vmatprep.subr.mxu0 0.0
      %357 = vmatpush1.msra.mxu0 0.0
      %358 = vmatprep.subr.mxu0 0.0
      %359 = vmatpush1.msra.mxu0 0.0
      %360 = vmatprep.subr.mxu0 0.0
      %361 = vmatpush1.msra.mxu0 0.0
      %362 = vmatprep.subr.mxu0 0.0
      %363 = vmatpush1.msra.mxu0 0.0
      %364 = vmatprep.subr.mxu0 0.0
      %365 = vmatpush1.msra.mxu0 0.0
      %366 = vmatprep.subr.mxu0 0.0
      %367 = vmatpush1.msra.mxu0 0.0
      %368 = vmatprep.subr.mxu0 0.0
      %369 = vmatpush1.msra.mxu0 0.0
      %370 = vmatprep.subr.mxu0 0.0
      %371 = vmatpush1.msra.mxu0 0.0
      %372 = vmatprep.subr.mxu0 0.0
      %373 = vmatpush1.msra.mxu0 0.0
      %374 = vmatprep.subr.mxu0 0.0
      %375 = vmatpush1.msra.mxu0 0.0
      %376 = vmatprep.subr.mxu0 0.0
      %377 = vmatpush1.msra.mxu0 0.0
      %378 = vmatprep.subr.mxu0 0.0
      %379 = vmatpush1.msra.mxu0 0.0
      %380 = vmatprep.subr.mxu0 0.0
      %381 = vmatpush1.msra.mxu0 0.0
      %382 = vmatprep.subr.mxu0 0.0
      %383 = vmatpush1.msra.mxu0 0.0
      %384 = vmatprep.subr.mxu0 0.0
      %385 = vmatpush1.msra.mxu0 0.0
      %386 = vmatprep.subr.mxu0 0.0
      %387 = vmatpush1.msra.mxu0 %v354
      %388 = vmatprep.subr.mxu0 0.0
      %389 = vmatpush2.msra.mxu0 0.0
      %390 = vmatprep.subr.mxu0 0.0
      %391 = vmatpush2.msra.mxu0 0.0
      %392 = vmatprep.subr.mxu0 0.0
      %393 = vmatpush2.msra.mxu0 0.0
      %394 = vmatprep.subr.mxu0 0.0
      %395 = vmatpush2.msra.mxu0 0.0
      %396 = vmatprep.subr.mxu0 0.0
      %397 = vmatpush2.msra.mxu0 0.0
      %398 = vmatprep.subr.mxu0 0.0
      %399 = vmatpush2.msra.mxu0 0.0
      %400 = vmatprep.subr.mxu0 0.0
      %401 = vmatpush2.msra.mxu0 0.0
      %402 = vmatprep.subr.mxu0 0.0
      %403 = vmatpush2.msra.mxu0 0.0
      %404 = vmatprep.subr.mxu0 0.0
      %405 = vmatpush2.msra.mxu0 0.0
      %406 = vmatprep.subr.mxu0 0.0
      %407 = vmatpush2.msra.mxu0 0.0
      %408 = vmatprep.subr.mxu0 0.0
      %409 = vmatpush2.msra.mxu0 0.0
      %410 = vmatprep.subr.mxu0 0.0
      %411 = vmatpush2.msra.mxu0 0.0
      %412 = vmatprep.subr.mxu0 0.0
      %413 = vmatpush2.msra.mxu0 0.0
      %414 = vmatprep.subr.mxu0 0.0
      %415 = vmatpush2.msra.mxu0 0.0
      %416 = vmatprep.subr.mxu0 0.0
      %417 = vmatpush2.msra.mxu0 0.0
      %418 = vmatprep.subr.mxu0 0.0
      %419 = vmatpush2.msra.mxu0 0.0
      %420 = vmatprep.mubr.f32.mxu0 0.0
      %421 = vmatmul.mubr.f32.gmra.mxu0 %v305
      %v422 = vpop.f32.mrf.mxu0
      %v423 = vadd.f32 0.0, %v422
      %v424 = vpop.f32.mrf.mxu0
      %425 = vmatprep.mubr.f32.mxu0 0.0
      %426 = vmatmul.mubr.f32.gmra.mxu0 %v308
      %v427 = vpop.f32.mrf.mxu0
      %v428 = vadd.f32 0.0, %v427
      %v429 = vpop.f32.mrf.mxu0
      %430 = vmatprep.mubr.f32.mxu0 0.0
      %431 = vmatmul.mubr.f32.gmra.mxu0 %v311
      %v432 = vpop.f32.mrf.mxu0
      %v433 = vadd.f32 0.0, %v432
      %v434 = vpop.f32.mrf.mxu0
      %435 = vmatprep.mubr.f32.mxu0 0.0
      %436 = vmatmul.mubr.f32.gmra.mxu0 %v314
      %v437 = vpop.f32.mrf.mxu0
      %v438 = vadd.f32 0.0, %v437
      %v439 = vpop.f32.mrf.mxu0
      %440 = vmatprep.mubr.f32.mxu0 0.0
      %441 = vmatmul.mubr.f32.gmra.mxu0 %v317
      %v442 = vpop.f32.mrf.mxu0
      %v443 = vadd.f32 0.0, %v442
      %v444 = vpop.f32.mrf.mxu0
      %445 = vmatprep.mubr.f32.mxu0 0.0
      %446 = vmatmul.mubr.f32.gmra.mxu0 %v320
      %v447 = vpop.f32.mrf.mxu0
      %v448 = vadd.f32 0.0, %v447
      %v449 = vpop.f32.mrf.mxu0
      %450 = vmatprep.mubr.f32.mxu0 0.0
      %451 = vmatmul.mubr.f32.gmra.mxu0 %v323
      %v452 = vpop.f32.mrf.mxu0
      %v453 = vadd.f32 0.0, %v452
      %v454 = vpop.f32.mrf.mxu0
      %455 = vmatprep.mubr.f32.mxu0 0.0
      %456 = vmatmul.mubr.f32.gmra.mxu0 %v326
      %v457 = vpop.f32.mrf.mxu0
      %v458 = vadd.f32 0.0, %v457
      %v459 = vpop.f32.mrf.mxu0
      %460 = vmatprep.mubr.f32.mxu0 0.0
      %461 = vmatmul.mubr.f32.gmra.mxu0 %v329
      %v462 = vpop.f32.mrf.mxu0
      %v463 = vadd.f32 0.0, %v462
      %v464 = vpop.f32.mrf.mxu0
      %465 = vmatprep.mubr.f32.mxu0 0.0
      %466 = vmatmul.mubr.f32.gmra.mxu0 %v332
      %v467 = vpop.f32.mrf.mxu0
      %v468 = vadd.f32 0.0, %v467
      %v469 = vpop.f32.mrf.mxu0
      %470 = vmatprep.mubr.f32.mxu0 0.0
      %471 = vmatmul.mubr.f32.gmra.mxu0 %v335
      %v472 = vpop.f32.mrf.mxu0
      %v473 = vadd.f32 0.0, %v472
      %v474 = vpop.f32.mrf.mxu0
      %475 = vmatprep.mubr.f32.mxu0 0.0
      %476 = vmatmul.mubr.f32.gmra.mxu0 %v338
      %v477 = vpop.f32.mrf.mxu0
      %v478 = vadd.f32 0.0, %v477
      %v479 = vpop.f32.mrf.mxu0
      %480 = vmatprep.mubr.f32.mxu0 0.0
      %481 = vmatmul.mubr.f32.gmra.mxu0 %v341
      %v482 = vpop.f32.mrf.mxu0
      %v483 = vadd.f32 0.0, %v482
      %v484 = vpop.f32.mrf.mxu0
      %485 = vmatprep.mubr.f32.mxu0 0.0
      %486 = vmatmul.mubr.f32.gmra.mxu0 %v344
      %v487 = vpop.f32.mrf.mxu0
      %v488 = vadd.f32 0.0, %v487
      %v489 = vpop.f32.mrf.mxu0
      %490 = vmatprep.mubr.f32.mxu0 0.0
      %491 = vmatmul.mubr.f32.gmra.mxu0 %v347
      %v492 = vpop.f32.mrf.mxu0
      %v493 = vadd.f32 0.0, %v492
      %v494 = vpop.f32.mrf.mxu0
      %495 = vmatprep.mubr.f32.mxu0 0.0
      %496 = vmatmul.mubr.f32.gmra.mxu0 %v350
      %v497 = vpop.f32.mrf.mxu0
      %v498 = vadd.f32 0.0, %v497
      %v499 = vpop.f32.mrf.mxu0
      %500 = vdwg.mxu0
      %501 = vxpose.xlu0.b32.start [1/16] %v423, 128
      %502 = vxpose.xlu0.b32.cont [2/16] %v428, 128
      %503 = vxpose.xlu0.b32.cont [3/16] %v433, 128
      %504 = vxpose.xlu0.b32.cont [4/16] %v438, 128
      %505 = vxpose.xlu0.b32.cont [5/16] %v443, 128
      %506 = vxpose.xlu0.b32.cont [6/16] %v448, 128
      %507 = vxpose.xlu0.b32.cont [7/16] %v453, 128
      %508 = vxpose.xlu0.b32.cont [8/16] %v458, 128
      %509 = vxpose.xlu0.b32.cont [9/16] %v463, 128
      %510 = vxpose.xlu0.b32.cont [10/16] %v468, 128
      %511 = vxpose.xlu0.b32.cont [11/16] %v473, 128
      %512 = vxpose.xlu0.b32.cont [12/16] %v478, 128
      %513 = vxpose.xlu0.b32.cont [13/16] %v483, 128
      %514 = vxpose.xlu0.b32.cont [14/16] %v488, 128
      %515 = vxpose.xlu0.b32.cont [15/16] %v493, 128
      %516 = vxpose.xlu0.b32.end [16/16] %v498, 128
      %v517 = vpop.trf.xlu0
      %v518 = vpop.trf.xlu0
      %v519 = vpop.trf.xlu0
      %v520 = vpop.trf.xlu0
      %v521 = vpop.trf.xlu0
      %v522 = vpop.trf.xlu0
      %v523 = vpop.trf.xlu0
      %v524 = vpop.trf.xlu0
      %v525 = vpop.trf.xlu0
      %v526 = vpop.trf.xlu0
      %v527 = vpop.trf.xlu0
      %v528 = vpop.trf.xlu0
      %v529 = vpop.trf.xlu0
      %v530 = vpop.trf.xlu0
      %v531 = vpop.trf.xlu0
      %v532 = vpop.trf.xlu0
      %534 = vset.pattern.permute.xlu0 0
      %535 = vperm.xlu0 %534, %v299
      %v536 = vpop.permute.xlu0 %535
      %539 = vset.pattern.permute.xlu0 0
      %540 = vperm.xlu0 %539, %v300
      %v541 = vpop.permute.xlu0 %540
      %544 = vset.pattern.permute.xlu0 0
      %545 = vperm.xlu0 %544, %v301
      %v546 = vpop.permute.xlu0 %545
      %549 = vset.pattern.permute.xlu0 0
      %550 = vperm.xlu0 %549, %v302
      %v551 = vpop.permute.xlu0 %550
      %v553 = vadd.f32 %v517, %v536
      %v554 = vadd.f32 %v518, %v541
      %v555 = vadd.f32 %v519, %v546
      %v556 = vadd.f32 %v520, %v551
      %v557 = vand.u32 2147483647, %v553
      %vm558 = vcmp.le.f32.partialorder %v557, 0.7853982
      %vm559 = vcmp.lt.s32.totalorder %v553, 0
      %v560 = vand.u32 %v553, 2139095040
      %v561 = vshrl.u32 %v560, 23
      %v562 = vsub.s32 %v561, 127
      %v563 = vand.u32 2147483647, %v553
      %v564 = vand.u32 %v563, 8388607
      %v565 = vor.u32 %v564, 8388608
      %v566 = vsub.s32 0, %v565
      %v567 = vadd.s32 %v562, 1
      %vm568 = vcmp.gt.s32.totalorder %v567, 0
      %v569 = vsel %vm568, %v567, 0
      %v570 = vshrl.u32 %v569, 5
      %v571 = vand.u32 %v569, 31
      %v572 = vsub.s32 32, %v571
      %v573 = vshrl.u32 683565275, %v572
      %v574 = vshll.u32 683565275, %v571
      %v575 = vshrl.u32 2475754826, %v572
      %v576 = vor.u32 %v574, %v575
      %v577 = vshll.u32 2475754826, %v571
      %v578 = vshrl.u32 2131351028, %v572
      %v579 = vor.u32 %v577, %v578
      %v580 = vshll.u32 2131351028, %v571
      %v581 = vshrl.u32 2102212464, %v572
      %v582 = vor.u32 %v580, %v581
      %v583 = vshll.u32 2102212464, %v571
      %v584 = vshrl.u32 920167782, %v572
      %v585 = vor.u32 %v583, %v584
      %v586 = vshll.u32 920167782, %v571
      %v587 = vshrl.u32 1326507024, %v572
      %v588 = vor.u32 %v586, %v587
      %vm589 = vcmp.lt.s32.totalorder %v570, 1
      %vm590 = vcmp.lt.s32.totalorder %v570, 2
      %vm591 = vcmp.lt.s32.totalorder %v570, 3
      %vm592 = vcmp.lt.s32.totalorder %v570, 4
      %v593 = vsel %vm589, %v573, %v576
      %v594 = vsel %vm592, %v582, 2102212464
      %v595 = vsel %vm591, %v579, %v594
      %v596 = vsel %vm590, %v593, %v595
      %v597 = vsel %vm589, %v576, %v579
      %v598 = vsel %vm592, %v585, 920167782
      %v599 = vsel %vm591, %v582, %v598
      %v600 = vsel %vm590, %v597, %v599
      %v601 = vsel %vm589, %v579, %v582
      %v602 = vsel %vm592, %v588, 1326507024
      %v603 = vsel %vm591, %v585, %v602
      %v604 = vsel %vm590, %v601, %v603
      %v605 = vshll.u32 %v565, 8
      %v606 = vmul.u32.u64.compose %v605, %v604
      %v607 = vextract.low.u32 %v606
      %v608 = vextract.high.u32 %v606
      %v609 = vmul.u32.u64.compose %v605, %v600
      %v610 = vextract.low.u32 %v609
      %v611 = vextract.high.u32 %v609
      %v612 = vmul.u32 %v605, %v596
      %v613 = vadd.s32 %v608, %v610
      %vm614 = vc.u32 %v608, %v610
      %v615 = vadd.s32 %v611, 1
      %v616 = vsel %vm614, %v615, %v611
      %v617 = vadd.s32 %v612, %v616
      %v618 = vadd.s32 %v617, 536870912
      %v619 = vshrl.u32 %v618, 30
      %v620 = vshll.u32 %v619, 30
      %v621 = vsub.s32 %v617, %v620
      %vm622 = vcmp.lt.s32.totalorder %v621, 0
      %v623 = vsub.s32 0, %v621
      %v624 = vsel %vm622, %v623, %v621
      %v625 = vclz %v624
      %v626 = vsub.s32 %v625, 2
      %vm627 = vcmp.gt.s32.totalorder 0, %v626
      %v628 = vsel %vm627, 0, %v626
      %v629 = vsub.s32 32, %v628
      %v630 = vshll.u32 %v621, %v628
      %v631 = vshrl.u32 %v613, %v629
      %v632 = vor.u32 %v630, %v631
      %v633 = vsub.s32 4294967266, %v628
      %v634 = vadd.s32 %v633, 127
      %v635 = vshll.u32 %v634, 23
      %v636 = vor.u32 4788187, %v635
      %v637 = vand.u32 2147483647, %v636
      %v639 = vcvt.s32.f32 %v632
      %v640 = vmul.f32 %v639, %v637
      %v641 = vxor.u32 %v640, 2147483648
      %v642 = vsel %vm559, %v641, %v640
      %v643 = vsub.s32 4, %v619
      %v644 = vsel %vm559, %v643, %v619
      %v645 = vsel %vm558, %v553, %v642
      %v646 = vsel %vm558, 0, %v644
      %v647 = vcosq.f32.pop %v645
      %v648 = vsinq.f32.pop %v645
      %vm649 = vweird.f32 %v553
      %v650 = vadd.s32 %v646, 3
      %v651 = vand.u32 %v650, 3
      %vm652 = vcmp.lt.s32.totalorder %v651, 2
      %vm653 = vcmp.eq.s32.totalorder %v651, 0
      %v654 = vxor.u32 %v648, 2147483648
      %v655 = vsel %vm653, %v647, %v654
      %vm656 = vcmp.eq.s32.totalorder %v651, 2
      %v657 = vxor.u32 %v647, 2147483648
      %v658 = vsel %vm656, %v657, %v648
      %v659 = vsel %vm652, %v655, %v658
      %v660 = vsel %vm649, nan, %v659
      %v661 = vand.u32 2147483647, %v554
      %vm662 = vcmp.le.f32.partialorder %v661, 0.7853982
      %vm663 = vcmp.lt.s32.totalorder %v554, 0
      %v664 = vand.u32 %v554, 2139095040
      %v665 = vshrl.u32 %v664, 23
      %v666 = vsub.s32 %v665, 127
      %v667 = vand.u32 2147483647, %v554
      %v668 = vand.u32 %v667, 8388607
      %v669 = vor.u32 %v668, 8388608
      %v670 = vsub.s32 0, %v669
      %v671 = vadd.s32 %v666, 1
      %vm672 = vcmp.gt.s32.totalorder %v671, 0
      %v673 = vsel %vm672, %v671, 0
      %v674 = vshrl.u32 %v673, 5
      %v675 = vand.u32 %v673, 31
      %v676 = vsub.s32 32, %v675
      %v677 = vshrl.u32 683565275, %v676
      %v678 = vshll.u32 683565275, %v675
      %v679 = vshrl.u32 2475754826, %v676
      %v680 = vor.u32 %v678, %v679
      %v681 = vshll.u32 2475754826, %v675
      %v682 = vshrl.u32 2131351028, %v676
      %v683 = vor.u32 %v681, %v682
      %v684 = vshll.u32 2131351028, %v675
      %v685 = vshrl.u32 2102212464, %v676
      %v686 = vor.u32 %v684, %v685
      %v687 = vshll.u32 2102212464, %v675
      %v688 = vshrl.u32 920167782, %v676
      %v689 = vor.u32 %v687, %v688
      %v690 = vshll.u32 920167782, %v675
      %v691 = vshrl.u32 1326507024, %v676
      %v692 = vor.u32 %v690, %v691
      %vm693 = vcmp.lt.s32.totalorder %v674, 1
      %vm694 = vcmp.lt.s32.totalorder %v674, 2
      %vm695 = vcmp.lt.s32.totalorder %v674, 3
      %vm696 = vcmp.lt.s32.totalorder %v674, 4
      %v697 = vsel %vm693, %v677, %v680
      %v698 = vsel %vm696, %v686, 2102212464
      %v699 = vsel %vm695, %v683, %v698
      %v700 = vsel %vm694, %v697, %v699
      %v701 = vsel %vm693, %v680, %v683
      %v702 = vsel %vm696, %v689, 920167782
      %v703 = vsel %vm695, %v686, %v702
      %v704 = vsel %vm694, %v701, %v703
      %v705 = vsel %vm693, %v683, %v686
      %v706 = vsel %vm696, %v692, 1326507024
      %v707 = vsel %vm695, %v689, %v706
      %v708 = vsel %vm694, %v705, %v707
      %v709 = vshll.u32 %v669, 8
      %v710 = vmul.u32.u64.compose %v709, %v708
      %v711 = vextract.low.u32 %v710
      %v712 = vextract.high.u32 %v710
      %v713 = vmul.u32.u64.compose %v709, %v704
      %v714 = vextract.low.u32 %v713
      %v715 = vextract.high.u32 %v713
      %v716 = vmul.u32 %v709, %v700
      %v717 = vadd.s32 %v712, %v714
      %vm718 = vc.u32 %v712, %v714
      %v719 = vadd.s32 %v715, 1
      %v720 = vsel %vm718, %v719, %v715
      %v721 = vadd.s32 %v716, %v720
      %v722 = vadd.s32 %v721, 536870912
      %v723 = vshrl.u32 %v722, 30
      %v724 = vshll.u32 %v723, 30
      %v725 = vsub.s32 %v721, %v724
      %vm726 = vcmp.lt.s32.totalorder %v725, 0
      %v727 = vsub.s32 0, %v725
      %v728 = vsel %vm726, %v727, %v725
      %v729 = vclz %v728
      %v730 = vsub.s32 %v729, 2
      %vm731 = vcmp.gt.s32.totalorder 0, %v730
      %v732 = vsel %vm731, 0, %v730
      %v733 = vsub.s32 32, %v732
      %v734 = vshll.u32 %v725, %v732
      %v735 = vshrl.u32 %v717, %v733
      %v736 = vor.u32 %v734, %v735
      %v737 = vsub.s32 4294967266, %v732
      %v738 = vadd.s32 %v737, 127
      %v739 = vshll.u32 %v738, 23
      %v740 = vor.u32 4788187, %v739
      %v741 = vand.u32 2147483647, %v740
      %v743 = vcvt.s32.f32 %v736
      %v744 = vmul.f32 %v743, %v741
      %v745 = vxor.u32 %v744, 2147483648
      %v746 = vsel %vm663, %v745, %v744
      %v747 = vsub.s32 4, %v723
      %v748 = vsel %vm663, %v747, %v723
      %v749 = vsel %vm662, %v554, %v746
      %v750 = vsel %vm662, 0, %v748
      %v751 = vcosq.f32.pop %v749
      %v752 = vsinq.f32.pop %v749
      %vm753 = vweird.f32 %v554
      %v754 = vadd.s32 %v750, 3
      %v755 = vand.u32 %v754, 3
      %vm756 = vcmp.lt.s32.totalorder %v755, 2
      %vm757 = vcmp.eq.s32.totalorder %v755, 0
      %v758 = vxor.u32 %v752, 2147483648
      %v759 = vsel %vm757, %v751, %v758
      %vm760 = vcmp.eq.s32.totalorder %v755, 2
      %v761 = vxor.u32 %v751, 2147483648
      %v762 = vsel %vm760, %v761, %v752
      %v763 = vsel %vm756, %v759, %v762
      %v764 = vsel %vm753, nan, %v763
      %v765 = vand.u32 2147483647, %v555
      %vm766 = vcmp.le.f32.partialorder %v765, 0.7853982
      %vm767 = vcmp.lt.s32.totalorder %v555, 0
      %v768 = vand.u32 %v555, 2139095040
      %v769 = vshrl.u32 %v768, 23
      %v770 = vsub.s32 %v769, 127
      %v771 = vand.u32 2147483647, %v555
      %v772 = vand.u32 %v771, 8388607
      %v773 = vor.u32 %v772, 8388608
      %v774 = vsub.s32 0, %v773
      %v775 = vadd.s32 %v770, 1
      %vm776 = vcmp.gt.s32.totalorder %v775, 0
      %v777 = vsel %vm776, %v775, 0
      %v778 = vshrl.u32 %v777, 5
      %v779 = vand.u32 %v777, 31
      %v780 = vsub.s32 32, %v779
      %v781 = vshrl.u32 683565275, %v780
      %v782 = vshll.u32 683565275, %v779
      %v783 = vshrl.u32 2475754826, %v780
      %v784 = vor.u32 %v782, %v783
      %v785 = vshll.u32 2475754826, %v779
      %v786 = vshrl.u32 2131351028, %v780
      %v787 = vor.u32 %v785, %v786
      %v788 = vshll.u32 2131351028, %v779
      %v789 = vshrl.u32 2102212464, %v780
      %v790 = vor.u32 %v788, %v789
      %v791 = vshll.u32 2102212464, %v779
      %v792 = vshrl.u32 920167782, %v780
      %v793 = vor.u32 %v791, %v792
      %v794 = vshll.u32 920167782, %v779
      %v795 = vshrl.u32 1326507024, %v780
      %v796 = vor.u32 %v794, %v795
      %vm797 = vcmp.lt.s32.totalorder %v778, 1
      %vm798 = vcmp.lt.s32.totalorder %v778, 2
      %vm799 = vcmp.lt.s32.totalorder %v778, 3
      %vm800 = vcmp.lt.s32.totalorder %v778, 4
      %v801 = vsel %vm797, %v781, %v784
      %v802 = vsel %vm800, %v790, 2102212464
      %v803 = vsel %vm799, %v787, %v802
      %v804 = vsel %vm798, %v801, %v803
      %v805 = vsel %vm797, %v784, %v787
      %v806 = vsel %vm800, %v793, 920167782
      %v807 = vsel %vm799, %v790, %v806
      %v808 = vsel %vm798, %v805, %v807
      %v809 = vsel %vm797, %v787, %v790
      %v810 = vsel %vm800, %v796, 1326507024
      %v811 = vsel %vm799, %v793, %v810
      %v812 = vsel %vm798, %v809, %v811
      %v813 = vshll.u32 %v773, 8
      %v814 = vmul.u32.u64.compose %v813, %v812
      %v815 = vextract.low.u32 %v814
      %v816 = vextract.high.u32 %v814
      %v817 = vmul.u32.u64.compose %v813, %v808
      %v818 = vextract.low.u32 %v817
      %v819 = vextract.high.u32 %v817
      %v820 = vmul.u32 %v813, %v804
      %v821 = vadd.s32 %v816, %v818
      %vm822 = vc.u32 %v816, %v818
      %v823 = vadd.s32 %v819, 1
      %v824 = vsel %vm822, %v823, %v819
      %v825 = vadd.s32 %v820, %v824
      %v826 = vadd.s32 %v825, 536870912
      %v827 = vshrl.u32 %v826, 30
      %v828 = vshll.u32 %v827, 30
      %v829 = vsub.s32 %v825, %v828
      %vm830 = vcmp.lt.s32.totalorder %v829, 0
      %v831 = vsub.s32 0, %v829
      %v832 = vsel %vm830, %v831, %v829
      %v833 = vclz %v832
      %v834 = vsub.s32 %v833, 2
      %vm835 = vcmp.gt.s32.totalorder 0, %v834
      %v836 = vsel %vm835, 0, %v834
      %v837 = vsub.s32 32, %v836
      %v838 = vshll.u32 %v829, %v836
      %v839 = vshrl.u32 %v821, %v837
      %v840 = vor.u32 %v838, %v839
      %v841 = vsub.s32 4294967266, %v836
      %v842 = vadd.s32 %v841, 127
      %v843 = vshll.u32 %v842, 23
      %v844 = vor.u32 4788187, %v843
      %v845 = vand.u32 2147483647, %v844
      %v847 = vcvt.s32.f32 %v840
      %v848 = vmul.f32 %v847, %v845
      %v849 = vxor.u32 %v848, 2147483648
      %v850 = vsel %vm767, %v849, %v848
      %v851 = vsub.s32 4, %v827
      %v852 = vsel %vm767, %v851, %v827
      %v853 = vsel %vm766, %v555, %v850
      %v854 = vsel %vm766, 0, %v852
      %v855 = vcosq.f32.pop %v853
      %v856 = vsinq.f32.pop %v853
      %vm857 = vweird.f32 %v555
      %v858 = vadd.s32 %v854, 3
      %v859 = vand.u32 %v858, 3
      %vm860 = vcmp.lt.s32.totalorder %v859, 2
      %vm861 = vcmp.eq.s32.totalorder %v859, 0
      %v862 = vxor.u32 %v856, 2147483648
      %v863 = vsel %vm861, %v855, %v862
      %vm864 = vcmp.eq.s32.totalorder %v859, 2
      %v865 = vxor.u32 %v855, 2147483648
      %v866 = vsel %vm864, %v865, %v856
      %v867 = vsel %vm860, %v863, %v866
      %v868 = vsel %vm857, nan, %v867
      %v869 = vand.u32 2147483647, %v556
      %vm870 = vcmp.le.f32.partialorder %v869, 0.7853982
      %vm871 = vcmp.lt.s32.totalorder %v556, 0
      %v872 = vand.u32 %v556, 2139095040
      %v873 = vshrl.u32 %v872, 23
      %v874 = vsub.s32 %v873, 127
      %v875 = vand.u32 2147483647, %v556
      %v876 = vand.u32 %v875, 8388607
      %v877 = vor.u32 %v876, 8388608
      %v878 = vsub.s32 0, %v877
      %v879 = vadd.s32 %v874, 1
      %vm880 = vcmp.gt.s32.totalorder %v879, 0
      %v881 = vsel %vm880, %v879, 0
      %v882 = vshrl.u32 %v881, 5
      %v883 = vand.u32 %v881, 31
      %v884 = vsub.s32 32, %v883
      %v885 = vshrl.u32 683565275, %v884
      %v886 = vshll.u32 683565275, %v883
      %v887 = vshrl.u32 2475754826, %v884
      %v888 = vor.u32 %v886, %v887
      %v889 = vshll.u32 2475754826, %v883
      %v890 = vshrl.u32 2131351028, %v884
      %v891 = vor.u32 %v889, %v890
      %v892 = vshll.u32 2131351028, %v883
      %v893 = vshrl.u32 2102212464, %v884
      %v894 = vor.u32 %v892, %v893
      %v895 = vshll.u32 2102212464, %v883
      %v896 = vshrl.u32 920167782, %v884
      %v897 = vor.u32 %v895, %v896
      %v898 = vshll.u32 920167782, %v883
      %v899 = vshrl.u32 1326507024, %v884
      %v900 = vor.u32 %v898, %v899
      %vm901 = vcmp.lt.s32.totalorder %v882, 1
      %vm902 = vcmp.lt.s32.totalorder %v882, 2
      %vm903 = vcmp.lt.s32.totalorder %v882, 3
      %vm904 = vcmp.lt.s32.totalorder %v882, 4
      %v905 = vsel %vm901, %v885, %v888
      %v906 = vsel %vm904, %v894, 2102212464
      %v907 = vsel %vm903, %v891, %v906
      %v908 = vsel %vm902, %v905, %v907
      %v909 = vsel %vm901, %v888, %v891
      %v910 = vsel %vm904, %v897, 920167782
      %v911 = vsel %vm903, %v894, %v910
      %v912 = vsel %vm902, %v909, %v911
      %v913 = vsel %vm901, %v891, %v894
      %v914 = vsel %vm904, %v900, 1326507024
      %v915 = vsel %vm903, %v897, %v914
      %v916 = vsel %vm902, %v913, %v915
      %v917 = vshll.u32 %v877, 8
      %v918 = vmul.u32.u64.compose %v917, %v916
      %v919 = vextract.low.u32 %v918
      %v920 = vextract.high.u32 %v918
      %v921 = vmul.u32.u64.compose %v917, %v912
      %v922 = vextract.low.u32 %v921
      %v923 = vextract.high.u32 %v921
      %v924 = vmul.u32 %v917, %v908
      %v925 = vadd.s32 %v920, %v922
      %vm926 = vc.u32 %v920, %v922
      %v927 = vadd.s32 %v923, 1
      %v928 = vsel %vm926, %v927, %v923
      %v929 = vadd.s32 %v924, %v928
      %v930 = vadd.s32 %v929, 536870912
      %v931 = vshrl.u32 %v930, 30
      %v932 = vshll.u32 %v931, 30
      %v933 = vsub.s32 %v929, %v932
      %vm934 = vcmp.lt.s32.totalorder %v933, 0
      %v935 = vsub.s32 0, %v933
      %v936 = vsel %vm934, %v935, %v933
      %v937 = vclz %v936
      %v938 = vsub.s32 %v937, 2
      %vm939 = vcmp.gt.s32.totalorder 0, %v938
      %v940 = vsel %vm939, 0, %v938
      %v941 = vsub.s32 32, %v940
      %v942 = vshll.u32 %v933, %v940
      %v943 = vshrl.u32 %v925, %v941
      %v944 = vor.u32 %v942, %v943
      %v945 = vsub.s32 4294967266, %v940
      %v946 = vadd.s32 %v945, 127
      %v947 = vshll.u32 %v946, 23
      %v948 = vor.u32 4788187, %v947
      %v949 = vand.u32 2147483647, %v948
      %v951 = vcvt.s32.f32 %v944
      %v952 = vmul.f32 %v951, %v949
      %v953 = vxor.u32 %v952, 2147483648
      %v954 = vsel %vm871, %v953, %v952
      %v955 = vsub.s32 4, %v931
      %v956 = vsel %vm871, %v955, %v931
      %v957 = vsel %vm870, %v556, %v954
      %v958 = vsel %vm870, 0, %v956
      %v959 = vcosq.f32.pop %v957
      %v960 = vsinq.f32.pop %v957
      %vm961 = vweird.f32 %v556
      %v962 = vadd.s32 %v958, 3
      %v963 = vand.u32 %v962, 3
      %vm964 = vcmp.lt.s32.totalorder %v963, 2
      %vm965 = vcmp.eq.s32.totalorder %v963, 0
      %v966 = vxor.u32 %v960, 2147483648
      %v967 = vsel %vm965, %v959, %v966
      %vm968 = vcmp.eq.s32.totalorder %v963, 2
      %v969 = vxor.u32 %v959, 2147483648
      %v970 = vsel %vm968, %v969, %v960
      %v971 = vsel %vm964, %v967, %v970
      %v972 = vsel %vm961, nan, %v971
      %v973 = vld [vmem:[%s3] sm:$0xff]
      %v974 = vld [vmem:[%s3 + $0x8] sm:$0xff]
      %v975 = vld [vmem:[%s3 + $0x10] sm:$0xff]
      %v976 = vld [vmem:[%s3 + $0x18] sm:$0xff]
      %v977 = vld [vmem:[%s4] sm:$0xff]
      %v978 = vld [vmem:[%s4 + $0x8] sm:$0xff]
      %v979 = vld [vmem:[%s4 + $0x10] sm:$0xff]
      %v980 = vld [vmem:[%s4 + $0x18] sm:$0xff]
      %982 = vset.pattern.permute.xlu0 0
      %983 = vperm.xlu0 %982, %v977
      %v984 = vpop.permute.xlu0 %983
      %987 = vset.pattern.permute.xlu0 0
      %988 = vperm.xlu0 %987, %v978
      %v989 = vpop.permute.xlu0 %988
      %992 = vset.pattern.permute.xlu0 0
      %993 = vperm.xlu0 %992, %v979
      %v994 = vpop.permute.xlu0 %993
      %997 = vset.pattern.permute.xlu0 0
      %998 = vperm.xlu0 %997, %v980
      %v999 = vpop.permute.xlu0 %998
      %vm1001 = vcmask 261120
      %v1003 = vsel %vm1001, %v973, 0
      %v1006 = vsel %vm1001, %v974, 0
      %v1009 = vsel %vm1001, %v975, 0
      %v1012 = vsel %vm1001, %v976, 0
      %1014 = vmatprep.subr.mxu0 0.0
      %1015 = vmatpush1.msra.mxu0 0.0
      %1016 = vmatprep.subr.mxu0 0.0
      %1017 = vmatpush1.msra.mxu0 0.0
      %1018 = vmatprep.subr.mxu0 0.0
      %1019 = vmatpush1.msra.mxu0 0.0
      %1020 = vmatprep.subr.mxu0 0.0
      %1021 = vmatpush1.msra.mxu0 0.0
      %1022 = vmatprep.subr.mxu0 0.0
      %1023 = vmatpush1.msra.mxu0 0.0
      %1024 = vmatprep.subr.mxu0 0.0
      %1025 = vmatpush1.msra.mxu0 0.0
      %1026 = vmatprep.subr.mxu0 0.0
      %1027 = vmatpush1.msra.mxu0 0.0
      %1028 = vmatprep.subr.mxu0 0.0
      %1029 = vmatpush1.msra.mxu0 0.0
      %1030 = vmatprep.subr.mxu0 0.0
      %1031 = vmatpush1.msra.mxu0 0.0
      %1032 = vmatprep.subr.mxu0 0.0
      %1033 = vmatpush1.msra.mxu0 0.0
      %1034 = vmatprep.subr.mxu0 0.0
      %1035 = vmatpush1.msra.mxu0 0.0
      %1036 = vmatprep.subr.mxu0 0.0
      %1037 = vmatpush1.msra.mxu0 0.0
      %1038 = vmatprep.subr.mxu0 0.0
      %1039 = vmatpush1.msra.mxu0 %v972
      %1040 = vmatprep.subr.mxu0 0.0
      %1041 = vmatpush1.msra.mxu0 %v868
      %1042 = vmatprep.subr.mxu0 0.0
      %1043 = vmatpush1.msra.mxu0 %v764
      %1044 = vmatprep.subr.mxu0 0.0
      %1045 = vmatpush1.msra.mxu0 %v660
      %1046 = vmatprep.subr.mxu0 0.0
      %1047 = vmatpush2.msra.mxu0 0.0
      %1048 = vmatprep.subr.mxu0 0.0
      %1049 = vmatpush2.msra.mxu0 0.0
      %1050 = vmatprep.subr.mxu0 0.0
      %1051 = vmatpush2.msra.mxu0 0.0
      %1052 = vmatprep.subr.mxu0 0.0
      %1053 = vmatpush2.msra.mxu0 0.0
      %1054 = vmatprep.subr.mxu0 0.0
      %1055 = vmatpush2.msra.mxu0 0.0
      %1056 = vmatprep.subr.mxu0 0.0
      %1057 = vmatpush2.msra.mxu0 0.0
      %1058 = vmatprep.subr.mxu0 0.0
      %1059 = vmatpush2.msra.mxu0 0.0
      %1060 = vmatprep.subr.mxu0 0.0
      %1061 = vmatpush2.msra.mxu0 0.0
      %1062 = vmatprep.subr.mxu0 0.0
      %1063 = vmatpush2.msra.mxu0 0.0
      %1064 = vmatprep.subr.mxu0 0.0
      %1065 = vmatpush2.msra.mxu0 0.0
      %1066 = vmatprep.subr.mxu0 0.0
      %1067 = vmatpush2.msra.mxu0 0.0
      %1068 = vmatprep.subr.mxu0 0.0
      %1069 = vmatpush2.msra.mxu0 0.0
      %1070 = vmatprep.subr.mxu0 0.0
      %1071 = vmatpush2.msra.mxu0 0.0
      %1072 = vmatprep.subr.mxu0 0.0
      %1073 = vmatpush2.msra.mxu0 0.0
      %1074 = vmatprep.subr.mxu0 0.0
      %1075 = vmatpush2.msra.mxu0 0.0
      %1076 = vmatprep.subr.mxu0 0.0
      %1077 = vmatpush2.msra.mxu0 0.0
      %1078 = vmatprep.mubr.f32.mxu0 0.0
      %1079 = vmatmul.mubr.f32.gmra.mxu0 %v1003
      %v1080 = vpop.f32.mrf.mxu0
      %v1081 = vadd.f32 %v984, %v1080
      %v1082 = vpop.f32.mrf.mxu0
      %1083 = vmatprep.mubr.f32.mxu0 0.0
      %1084 = vmatmul.mubr.f32.gmra.mxu0 %v1006
      %v1085 = vpop.f32.mrf.mxu0
      %v1086 = vadd.f32 %v989, %v1085
      %v1087 = vpop.f32.mrf.mxu0
      %1088 = vmatprep.mubr.f32.mxu0 0.0
      %1089 = vmatmul.mubr.f32.gmra.mxu0 %v1009
      %v1090 = vpop.f32.mrf.mxu0
      %v1091 = vadd.f32 %v994, %v1090
      %v1092 = vpop.f32.mrf.mxu0
      %1093 = vmatprep.mubr.f32.mxu0 0.0
      %1094 = vmatmul.mubr.f32.gmra.mxu0 %v1012
      %v1095 = vpop.f32.mrf.mxu0
      %v1096 = vadd.f32 %v999, %v1095
      %v1097 = vpop.f32.mrf.mxu0
      %1098 = vdwg.mxu0
      %v1099 = vand.u32 2147483647, %v1081
      %vm1100 = vcmp.le.f32.partialorder %v1099, 0.7853982
      %vm1101 = vcmp.lt.s32.totalorder %v1081, 0
      %v1102 = vand.u32 %v1081, 2139095040
      %v1103 = vshrl.u32 %v1102, 23
      %v1104 = vsub.s32 %v1103, 127
      %v1105 = vand.u32 2147483647, %v1081
      %v1106 = vand.u32 %v1105, 8388607
      %v1107 = vor.u32 %v1106, 8388608
      %v1108 = vsub.s32 0, %v1107
      %v1109 = vadd.s32 %v1104, 1
      %vm1110 = vcmp.gt.s32.totalorder %v1109, 0
      %v1111 = vsel %vm1110, %v1109, 0
      %v1112 = vshrl.u32 %v1111, 5
      %v1113 = vand.u32 %v1111, 31
      %v1114 = vsub.s32 32, %v1113
      %v1115 = vshrl.u32 683565275, %v1114
      %v1116 = vshll.u32 683565275, %v1113
      %v1117 = vshrl.u32 2475754826, %v1114
      %v1118 = vor.u32 %v1116, %v1117
      %v1119 = vshll.u32 2475754826, %v1113
      %v1120 = vshrl.u32 2131351028, %v1114
      %v1121 = vor.u32 %v1119, %v1120
      %v1122 = vshll.u32 2131351028, %v1113
      %v1123 = vshrl.u32 2102212464, %v1114
      %v1124 = vor.u32 %v1122, %v1123
      %v1125 = vshll.u32 2102212464, %v1113
      %v1126 = vshrl.u32 920167782, %v1114
      %v1127 = vor.u32 %v1125, %v1126
      %v1128 = vshll.u32 920167782, %v1113
      %v1129 = vshrl.u32 1326507024, %v1114
      %v1130 = vor.u32 %v1128, %v1129
      %vm1131 = vcmp.lt.s32.totalorder %v1112, 1
      %vm1132 = vcmp.lt.s32.totalorder %v1112, 2
      %vm1133 = vcmp.lt.s32.totalorder %v1112, 3
      %vm1134 = vcmp.lt.s32.totalorder %v1112, 4
      %v1135 = vsel %vm1131, %v1115, %v1118
      %v1136 = vsel %vm1134, %v1124, 2102212464
      %v1137 = vsel %vm1133, %v1121, %v1136
      %v1138 = vsel %vm1132, %v1135, %v1137
      %v1139 = vsel %vm1131, %v1118, %v1121
      %v1140 = vsel %vm1134, %v1127, 920167782
      %v1141 = vsel %vm1133, %v1124, %v1140
      %v1142 = vsel %vm1132, %v1139, %v1141
      %v1143 = vsel %vm1131, %v1121, %v1124
      %v1144 = vsel %vm1134, %v1130, 1326507024
      %v1145 = vsel %vm1133, %v1127, %v1144
      %v1146 = vsel %vm1132, %v1143, %v1145
      %v1147 = vshll.u32 %v1107, 8
      %v1148 = vmul.u32.u64.compose %v1147, %v1146
      %v1149 = vextract.low.u32 %v1148
      %v1150 = vextract.high.u32 %v1148
      %v1151 = vmul.u32.u64.compose %v1147, %v1142
      %v1152 = vextract.low.u32 %v1151
      %v1153 = vextract.high.u32 %v1151
      %v1154 = vmul.u32 %v1147, %v1138
      %v1155 = vadd.s32 %v1150, %v1152
      %vm1156 = vc.u32 %v1150, %v1152
      %v1157 = vadd.s32 %v1153, 1
      %v1158 = vsel %vm1156, %v1157, %v1153
      %v1159 = vadd.s32 %v1154, %v1158
      %v1160 = vadd.s32 %v1159, 536870912
      %v1161 = vshrl.u32 %v1160, 30
      %v1162 = vshll.u32 %v1161, 30
      %v1163 = vsub.s32 %v1159, %v1162
      %vm1164 = vcmp.lt.s32.totalorder %v1163, 0
      %v1165 = vsub.s32 0, %v1163
      %v1166 = vsel %vm1164, %v1165, %v1163
      %v1167 = vclz %v1166
      %v1168 = vsub.s32 %v1167, 2
      %vm1169 = vcmp.gt.s32.totalorder 0, %v1168
      %v1170 = vsel %vm1169, 0, %v1168
      %v1171 = vsub.s32 32, %v1170
      %v1172 = vshll.u32 %v1163, %v1170
      %v1173 = vshrl.u32 %v1155, %v1171
      %v1174 = vor.u32 %v1172, %v1173
      %v1175 = vsub.s32 4294967266, %v1170
      %v1176 = vadd.s32 %v1175, 127
      %v1177 = vshll.u32 %v1176, 23
      %v1178 = vor.u32 4788187, %v1177
      %v1179 = vand.u32 2147483647, %v1178
      %v1181 = vcvt.s32.f32 %v1174
      %v1182 = vmul.f32 %v1181, %v1179
      %v1183 = vxor.u32 %v1182, 2147483648
      %v1184 = vsel %vm1101, %v1183, %v1182
      %v1185 = vsub.s32 4, %v1161
      %v1186 = vsel %vm1101, %v1185, %v1161
      %v1187 = vsel %vm1100, %v1081, %v1184
      %v1188 = vsel %vm1100, 0, %v1186
      %v1189 = vcosq.f32.pop %v1187
      %v1190 = vsinq.f32.pop %v1187
      %vm1191 = vweird.f32 %v1081
      %v1192 = vadd.s32 %v1188, 3
      %v1193 = vand.u32 %v1192, 3
      %vm1194 = vcmp.lt.s32.totalorder %v1193, 2
      %vm1195 = vcmp.eq.s32.totalorder %v1193, 0
      %v1196 = vxor.u32 %v1190, 2147483648
      %v1197 = vsel %vm1195, %v1189, %v1196
      %vm1198 = vcmp.eq.s32.totalorder %v1193, 2
      %v1199 = vxor.u32 %v1189, 2147483648
      %v1200 = vsel %vm1198, %v1199, %v1190
      %v1201 = vsel %vm1194, %v1197, %v1200
      %v1202 = vsel %vm1191, nan, %v1201
      %v1203 = vand.u32 2147483647, %v1086
      %vm1204 = vcmp.le.f32.partialorder %v1203, 0.7853982
      %vm1205 = vcmp.lt.s32.totalorder %v1086, 0
      %v1206 = vand.u32 %v1086, 2139095040
      %v1207 = vshrl.u32 %v1206, 23
      %v1208 = vsub.s32 %v1207, 127
      %v1209 = vand.u32 2147483647, %v1086
      %v1210 = vand.u32 %v1209, 8388607
      %v1211 = vor.u32 %v1210, 8388608
      %v1212 = vsub.s32 0, %v1211
      %v1213 = vadd.s32 %v1208, 1
      %vm1214 = vcmp.gt.s32.totalorder %v1213, 0
      %v1215 = vsel %vm1214, %v1213, 0
      %v1216 = vshrl.u32 %v1215, 5
      %v1217 = vand.u32 %v1215, 31
      %v1218 = vsub.s32 32, %v1217
      %v1219 = vshrl.u32 683565275, %v1218
      %v1220 = vshll.u32 683565275, %v1217
      %v1221 = vshrl.u32 2475754826, %v1218
      %v1222 = vor.u32 %v1220, %v1221
      %v1223 = vshll.u32 2475754826, %v1217
      %v1224 = vshrl.u32 2131351028, %v1218
      %v1225 = vor.u32 %v1223, %v1224
      %v1226 = vshll.u32 2131351028, %v1217
      %v1227 = vshrl.u32 2102212464, %v1218
      %v1228 = vor.u32 %v1226, %v1227
      %v1229 = vshll.u32 2102212464, %v1217
      %v1230 = vshrl.u32 920167782, %v1218
      %v1231 = vor.u32 %v1229, %v1230
      %v1232 = vshll.u32 920167782, %v1217
      %v1233 = vshrl.u32 1326507024, %v1218
      %v1234 = vor.u32 %v1232, %v1233
      %vm1235 = vcmp.lt.s32.totalorder %v1216, 1
      %vm1236 = vcmp.lt.s32.totalorder %v1216, 2
      %vm1237 = vcmp.lt.s32.totalorder %v1216, 3
      %vm1238 = vcmp.lt.s32.totalorder %v1216, 4
      %v1239 = vsel %vm1235, %v1219, %v1222
      %v1240 = vsel %vm1238, %v1228, 2102212464
      %v1241 = vsel %vm1237, %v1225, %v1240
      %v1242 = vsel %vm1236, %v1239, %v1241
      %v1243 = vsel %vm1235, %v1222, %v1225
      %v1244 = vsel %vm1238, %v1231, 920167782
      %v1245 = vsel %vm1237, %v1228, %v1244
      %v1246 = vsel %vm1236, %v1243, %v1245
      %v1247 = vsel %vm1235, %v1225, %v1228
      %v1248 = vsel %vm1238, %v1234, 1326507024
      %v1249 = vsel %vm1237, %v1231, %v1248
      %v1250 = vsel %vm1236, %v1247, %v1249
      %v1251 = vshll.u32 %v1211, 8
      %v1252 = vmul.u32.u64.compose %v1251, %v1250
      %v1253 = vextract.low.u32 %v1252
      %v1254 = vextract.high.u32 %v1252
      %v1255 = vmul.u32.u64.compose %v1251, %v1246
      %v1256 = vextract.low.u32 %v1255
      %v1257 = vextract.high.u32 %v1255
      %v1258 = vmul.u32 %v1251, %v1242
      %v1259 = vadd.s32 %v1254, %v1256
      %vm1260 = vc.u32 %v1254, %v1256
      %v1261 = vadd.s32 %v1257, 1
      %v1262 = vsel %vm1260, %v1261, %v1257
      %v1263 = vadd.s32 %v1258, %v1262
      %v1264 = vadd.s32 %v1263, 536870912
      %v1265 = vshrl.u32 %v1264, 30
      %v1266 = vshll.u32 %v1265, 30
      %v1267 = vsub.s32 %v1263, %v1266
      %vm1268 = vcmp.lt.s32.totalorder %v1267, 0
      %v1269 = vsub.s32 0, %v1267
      %v1270 = vsel %vm1268, %v1269, %v1267
      %v1271 = vclz %v1270
      %v1272 = vsub.s32 %v1271, 2
      %vm1273 = vcmp.gt.s32.totalorder 0, %v1272
      %v1274 = vsel %vm1273, 0, %v1272
      %v1275 = vsub.s32 32, %v1274
      %v1276 = vshll.u32 %v1267, %v1274
      %v1277 = vshrl.u32 %v1259, %v1275
      %v1278 = vor.u32 %v1276, %v1277
      %v1279 = vsub.s32 4294967266, %v1274
      %v1280 = vadd.s32 %v1279, 127
      %v1281 = vshll.u32 %v1280, 23
      %v1282 = vor.u32 4788187, %v1281
      %v1283 = vand.u32 2147483647, %v1282
      %v1285 = vcvt.s32.f32 %v1278
      %v1286 = vmul.f32 %v1285, %v1283
      %v1287 = vxor.u32 %v1286, 2147483648
      %v1288 = vsel %vm1205, %v1287, %v1286
      %v1289 = vsub.s32 4, %v1265
      %v1290 = vsel %vm1205, %v1289, %v1265
      %v1291 = vsel %vm1204, %v1086, %v1288
      %v1292 = vsel %vm1204, 0, %v1290
      %v1293 = vcosq.f32.pop %v1291
      %v1294 = vsinq.f32.pop %v1291
      %vm1295 = vweird.f32 %v1086
      %v1296 = vadd.s32 %v1292, 3
      %v1297 = vand.u32 %v1296, 3
      %vm1298 = vcmp.lt.s32.totalorder %v1297, 2
      %vm1299 = vcmp.eq.s32.totalorder %v1297, 0
      %v1300 = vxor.u32 %v1294, 2147483648
      %v1301 = vsel %vm1299, %v1293, %v1300
      %vm1302 = vcmp.eq.s32.totalorder %v1297, 2
      %v1303 = vxor.u32 %v1293, 2147483648
      %v1304 = vsel %vm1302, %v1303, %v1294
      %v1305 = vsel %vm1298, %v1301, %v1304
      %v1306 = vsel %vm1295, nan, %v1305
      %v1307 = vand.u32 2147483647, %v1091
      %vm1308 = vcmp.le.f32.partialorder %v1307, 0.7853982
      %vm1309 = vcmp.lt.s32.totalorder %v1091, 0
      %v1310 = vand.u32 %v1091, 2139095040
      %v1311 = vshrl.u32 %v1310, 23
      %v1312 = vsub.s32 %v1311, 127
      %v1313 = vand.u32 2147483647, %v1091
      %v1314 = vand.u32 %v1313, 8388607
      %v1315 = vor.u32 %v1314, 8388608
      %v1316 = vsub.s32 0, %v1315
      %v1317 = vadd.s32 %v1312, 1
      %vm1318 = vcmp.gt.s32.totalorder %v1317, 0
      %v1319 = vsel %vm1318, %v1317, 0
      %v1320 = vshrl.u32 %v1319, 5
      %v1321 = vand.u32 %v1319, 31
      %v1322 = vsub.s32 32, %v1321
      %v1323 = vshrl.u32 683565275, %v1322
      %v1324 = vshll.u32 683565275, %v1321
      %v1325 = vshrl.u32 2475754826, %v1322
      %v1326 = vor.u32 %v1324, %v1325
      %v1327 = vshll.u32 2475754826, %v1321
      %v1328 = vshrl.u32 2131351028, %v1322
      %v1329 = vor.u32 %v1327, %v1328
      %v1330 = vshll.u32 2131351028, %v1321
      %v1331 = vshrl.u32 2102212464, %v1322
      %v1332 = vor.u32 %v1330, %v1331
      %v1333 = vshll.u32 2102212464, %v1321
      %v1334 = vshrl.u32 920167782, %v1322
      %v1335 = vor.u32 %v1333, %v1334
      %v1336 = vshll.u32 920167782, %v1321
      %v1337 = vshrl.u32 1326507024, %v1322
      %v1338 = vor.u32 %v1336, %v1337
      %vm1339 = vcmp.lt.s32.totalorder %v1320, 1
      %vm1340 = vcmp.lt.s32.totalorder %v1320, 2
      %vm1341 = vcmp.lt.s32.totalorder %v1320, 3
      %vm1342 = vcmp.lt.s32.totalorder %v1320, 4
      %v1343 = vsel %vm1339, %v1323, %v1326
      %v1344 = vsel %vm1342, %v1332, 2102212464
      %v1345 = vsel %vm1341, %v1329, %v1344
      %v1346 = vsel %vm1340, %v1343, %v1345
      %v1347 = vsel %vm1339, %v1326, %v1329
      %v1348 = vsel %vm1342, %v1335, 920167782
      %v1349 = vsel %vm1341, %v1332, %v1348
      %v1350 = vsel %vm1340, %v1347, %v1349
      %v1351 = vsel %vm1339, %v1329, %v1332
      %v1352 = vsel %vm1342, %v1338, 1326507024
      %v1353 = vsel %vm1341, %v1335, %v1352
      %v1354 = vsel %vm1340, %v1351, %v1353
      %v1355 = vshll.u32 %v1315, 8
      %v1356 = vmul.u32.u64.compose %v1355, %v1354
      %v1357 = vextract.low.u32 %v1356
      %v1358 = vextract.high.u32 %v1356
      %v1359 = vmul.u32.u64.compose %v1355, %v1350
      %v1360 = vextract.low.u32 %v1359
      %v1361 = vextract.high.u32 %v1359
      %v1362 = vmul.u32 %v1355, %v1346
      %v1363 = vadd.s32 %v1358, %v1360
      %vm1364 = vc.u32 %v1358, %v1360
      %v1365 = vadd.s32 %v1361, 1
      %v1366 = vsel %vm1364, %v1365, %v1361
      %v1367 = vadd.s32 %v1362, %v1366
      %v1368 = vadd.s32 %v1367, 536870912
      %v1369 = vshrl.u32 %v1368, 30
      %v1370 = vshll.u32 %v1369, 30
      %v1371 = vsub.s32 %v1367, %v1370
      %vm1372 = vcmp.lt.s32.totalorder %v1371, 0
      %v1373 = vsub.s32 0, %v1371
      %v1374 = vsel %vm1372, %v1373, %v1371
      %v1375 = vclz %v1374
      %v1376 = vsub.s32 %v1375, 2
      %vm1377 = vcmp.gt.s32.totalorder 0, %v1376
      %v1378 = vsel %vm1377, 0, %v1376
      %v1379 = vsub.s32 32, %v1378
      %v1380 = vshll.u32 %v1371, %v1378
      %v1381 = vshrl.u32 %v1363, %v1379
      %v1382 = vor.u32 %v1380, %v1381
      %v1383 = vsub.s32 4294967266, %v1378
      %v1384 = vadd.s32 %v1383, 127
      %v1385 = vshll.u32 %v1384, 23
      %v1386 = vor.u32 4788187, %v1385
      %v1387 = vand.u32 2147483647, %v1386
      %v1389 = vcvt.s32.f32 %v1382
      %v1390 = vmul.f32 %v1389, %v1387
      %v1391 = vxor.u32 %v1390, 2147483648
      %v1392 = vsel %vm1309, %v1391, %v1390
      %v1393 = vsub.s32 4, %v1369
      %v1394 = vsel %vm1309, %v1393, %v1369
      %v1395 = vsel %vm1308, %v1091, %v1392
      %v1396 = vsel %vm1308, 0, %v1394
      %v1397 = vcosq.f32.pop %v1395
      %v1398 = vsinq.f32.pop %v1395
      %vm1399 = vweird.f32 %v1091
      %v1400 = vadd.s32 %v1396, 3
      %v1401 = vand.u32 %v1400, 3
      %vm1402 = vcmp.lt.s32.totalorder %v1401, 2
      %vm1403 = vcmp.eq.s32.totalorder %v1401, 0
      %v1404 = vxor.u32 %v1398, 2147483648
      %v1405 = vsel %vm1403, %v1397, %v1404
      %vm1406 = vcmp.eq.s32.totalorder %v1401, 2
      %v1407 = vxor.u32 %v1397, 2147483648
      %v1408 = vsel %vm1406, %v1407, %v1398
      %v1409 = vsel %vm1402, %v1405, %v1408
      %v1410 = vsel %vm1399, nan, %v1409
      %v1411 = vand.u32 2147483647, %v1096
      %vm1412 = vcmp.le.f32.partialorder %v1411, 0.7853982
      %vm1413 = vcmp.lt.s32.totalorder %v1096, 0
      %v1414 = vand.u32 %v1096, 2139095040
      %v1415 = vshrl.u32 %v1414, 23
      %v1416 = vsub.s32 %v1415, 127
      %v1417 = vand.u32 2147483647, %v1096
      %v1418 = vand.u32 %v1417, 8388607
      %v1419 = vor.u32 %v1418, 8388608
      %v1420 = vsub.s32 0, %v1419
      %v1421 = vadd.s32 %v1416, 1
      %vm1422 = vcmp.gt.s32.totalorder %v1421, 0
      %v1423 = vsel %vm1422, %v1421, 0
      %v1424 = vshrl.u32 %v1423, 5
      %v1425 = vand.u32 %v1423, 31
      %v1426 = vsub.s32 32, %v1425
      %v1427 = vshrl.u32 683565275, %v1426
      %v1428 = vshll.u32 683565275, %v1425
      %v1429 = vshrl.u32 2475754826, %v1426
      %v1430 = vor.u32 %v1428, %v1429
      %v1431 = vshll.u32 2475754826, %v1425
      %v1432 = vshrl.u32 2131351028, %v1426
      %v1433 = vor.u32 %v1431, %v1432
      %v1434 = vshll.u32 2131351028, %v1425
      %v1435 = vshrl.u32 2102212464, %v1426
      %v1436 = vor.u32 %v1434, %v1435
      %v1437 = vshll.u32 2102212464, %v1425
      %v1438 = vshrl.u32 920167782, %v1426
      %v1439 = vor.u32 %v1437, %v1438
      %v1440 = vshll.u32 920167782, %v1425
      %v1441 = vshrl.u32 1326507024, %v1426
      %v1442 = vor.u32 %v1440, %v1441
      %vm1443 = vcmp.lt.s32.totalorder %v1424, 1
      %vm1444 = vcmp.lt.s32.totalorder %v1424, 2
      %vm1445 = vcmp.lt.s32.totalorder %v1424, 3
      %vm1446 = vcmp.lt.s32.totalorder %v1424, 4
      %v1447 = vsel %vm1443, %v1427, %v1430
      %v1448 = vsel %vm1446, %v1436, 2102212464
      %v1449 = vsel %vm1445, %v1433, %v1448
      %v1450 = vsel %vm1444, %v1447, %v1449
      %v1451 = vsel %vm1443, %v1430, %v1433
      %v1452 = vsel %vm1446, %v1439, 920167782
      %v1453 = vsel %vm1445, %v1436, %v1452
      %v1454 = vsel %vm1444, %v1451, %v1453
      %v1455 = vsel %vm1443, %v1433, %v1436
      %v1456 = vsel %vm1446, %v1442, 1326507024
      %v1457 = vsel %vm1445, %v1439, %v1456
      %v1458 = vsel %vm1444, %v1455, %v1457
      %v1459 = vshll.u32 %v1419, 8
      %v1460 = vmul.u32.u64.compose %v1459, %v1458
      %v1461 = vextract.low.u32 %v1460
      %v1462 = vextract.high.u32 %v1460
      %v1463 = vmul.u32.u64.compose %v1459, %v1454
      %v1464 = vextract.low.u32 %v1463
      %v1465 = vextract.high.u32 %v1463
      %v1466 = vmul.u32 %v1459, %v1450
      %v1467 = vadd.s32 %v1462, %v1464
      %vm1468 = vc.u32 %v1462, %v1464
      %v1469 = vadd.s32 %v1465, 1
      %v1470 = vsel %vm1468, %v1469, %v1465
      %v1471 = vadd.s32 %v1466, %v1470
      %v1472 = vadd.s32 %v1471, 536870912
      %v1473 = vshrl.u32 %v1472, 30
      %v1474 = vshll.u32 %v1473, 30
      %v1475 = vsub.s32 %v1471, %v1474
      %vm1476 = vcmp.lt.s32.totalorder %v1475, 0
      %v1477 = vsub.s32 0, %v1475
      %v1478 = vsel %vm1476, %v1477, %v1475
      %v1479 = vclz %v1478
      %v1480 = vsub.s32 %v1479, 2
      %vm1481 = vcmp.gt.s32.totalorder 0, %v1480
      %v1482 = vsel %vm1481, 0, %v1480
      %v1483 = vsub.s32 32, %v1482
      %v1484 = vshll.u32 %v1475, %v1482
      %v1485 = vshrl.u32 %v1467, %v1483
      %v1486 = vor.u32 %v1484, %v1485
      %v1487 = vsub.s32 4294967266, %v1482
      %v1488 = vadd.s32 %v1487, 127
      %v1489 = vshll.u32 %v1488, 23
      %v1490 = vor.u32 4788187, %v1489
      %v1491 = vand.u32 2147483647, %v1490
      %v1493 = vcvt.s32.f32 %v1486
      %v1494 = vmul.f32 %v1493, %v1491
      %v1495 = vxor.u32 %v1494, 2147483648
      %v1496 = vsel %vm1413, %v1495, %v1494
      %v1497 = vsub.s32 4, %v1473
      %v1498 = vsel %vm1413, %v1497, %v1473
      %v1499 = vsel %vm1412, %v1096, %v1496
      %v1500 = vsel %vm1412, 0, %v1498
      %v1501 = vcosq.f32.pop %v1499
      %v1502 = vsinq.f32.pop %v1499
      %vm1503 = vweird.f32 %v1096
      %v1504 = vadd.s32 %v1500, 3
      %v1505 = vand.u32 %v1504, 3
      %vm1506 = vcmp.lt.s32.totalorder %v1505, 2
      %vm1507 = vcmp.eq.s32.totalorder %v1505, 0
      %v1508 = vxor.u32 %v1502, 2147483648
      %v1509 = vsel %vm1507, %v1501, %v1508
      %vm1510 = vcmp.eq.s32.totalorder %v1505, 2
      %v1511 = vxor.u32 %v1501, 2147483648
      %v1512 = vsel %vm1510, %v1511, %v1502
      %v1513 = vsel %vm1506, %v1509, %v1512
      %v1514 = vsel %vm1503, nan, %v1513
      %v1515 = vld [vmem:[%s5] sm:$0xff]
      %v1516 = vld [vmem:[%s5 + $0x8] sm:$0xff]
      %v1517 = vld [vmem:[%s5 + $0x10] sm:$0xff]
      %v1518 = vld [vmem:[%s5 + $0x18] sm:$0xff]
      %v1519 = vld [vmem:[%s6] sm:$0x1]
      %1520 = vxpose.xlu0.b32.start [1/16] %v1202, 128
      %1521 = vxpose.xlu0.b32.cont [2/16] %v1306, 128
      %1522 = vxpose.xlu0.b32.cont [3/16] %v1410, 128
      %1523 = vxpose.xlu0.b32.cont [4/16] %v1514, 128
      %1524 = vxpose.xlu0.b32.cont [5/16] 0.0, 128
      %1525 = vxpose.xlu0.b32.cont [6/16] 0.0, 128
      %1526 = vxpose.xlu0.b32.cont [7/16] 0.0, 128
      %1527 = vxpose.xlu0.b32.cont [8/16] 0.0, 128
      %1528 = vxpose.xlu0.b32.cont [9/16] 0.0, 128
      %1529 = vxpose.xlu0.b32.cont [10/16] 0.0, 128
      %1530 = vxpose.xlu0.b32.cont [11/16] 0.0, 128
      %1531 = vxpose.xlu0.b32.cont [12/16] 0.0, 128
      %1532 = vxpose.xlu0.b32.cont [13/16] 0.0, 128
      %1533 = vxpose.xlu0.b32.cont [14/16] 0.0, 128
      %1534 = vxpose.xlu0.b32.cont [15/16] 0.0, 128
      %1535 = vxpose.xlu0.b32.end [16/16] 0.0, 128
      %v1536 = vpop.trf.xlu0
      %v1537 = vpop.trf.xlu0
      %v1538 = vpop.trf.xlu0
      %v1539 = vpop.trf.xlu0
      %v1540 = vpop.trf.xlu0
      %v1541 = vpop.trf.xlu0
      %v1542 = vpop.trf.xlu0
      %v1543 = vpop.trf.xlu0
      %v1544 = vpop.trf.xlu0
      %v1545 = vpop.trf.xlu0
      %v1546 = vpop.trf.xlu0
      %v1547 = vpop.trf.xlu0
      %v1548 = vpop.trf.xlu0
      %v1549 = vpop.trf.xlu0
      %v1550 = vpop.trf.xlu0
      %v1551 = vpop.trf.xlu0
      %v1553 = vlaneseq
      %v1554 = vshrl.u32 %v1553, 7
      %v1555 = vsub.s32 0, %v1554
      %v1556 = vrot.slane %v1519, %v1555
      %v1559 = vsel %vm1001, %v1536, 0
      %v1562 = vsel %vm1001, %v1537, 0
      %v1565 = vsel %vm1001, %v1538, 0
      %v1568 = vsel %vm1001, %v1539, 0
      %v1571 = vsel %vm1001, %v1540, 0
      %v1574 = vsel %vm1001, %v1541, 0
      %v1577 = vsel %vm1001, %v1542, 0
      %v1580 = vsel %vm1001, %v1543, 0
      %v1583 = vsel %vm1001, %v1544, 0
      %v1586 = vsel %vm1001, %v1545, 0
      %v1589 = vsel %vm1001, %v1546, 0
      %v1592 = vsel %vm1001, %v1547, 0
      %v1595 = vsel %vm1001, %v1548, 0
      %v1598 = vsel %vm1001, %v1549, 0
      %v1601 = vsel %vm1001, %v1550, 0
      %v1604 = vsel %vm1001, %v1551, 0
      %1606 = vmatprep.subr.mxu0 0.0
      %1607 = vmatpush1.msra.mxu0 0.0
      %1608 = vmatprep.subr.mxu0 0.0
      %1609 = vmatpush1.msra.mxu0 0.0
      %1610 = vmatprep.subr.mxu0 0.0
      %1611 = vmatpush1.msra.mxu0 0.0
      %1612 = vmatprep.subr.mxu0 0.0
      %1613 = vmatpush1.msra.mxu0 0.0
      %1614 = vmatprep.subr.mxu0 0.0
      %1615 = vmatpush1.msra.mxu0 0.0
      %1616 = vmatprep.subr.mxu0 0.0
      %1617 = vmatpush1.msra.mxu0 0.0
      %1618 = vmatprep.subr.mxu0 0.0
      %1619 = vmatpush1.msra.mxu0 0.0
      %1620 = vmatprep.subr.mxu0 0.0
      %1621 = vmatpush1.msra.mxu0 0.0
      %1622 = vmatprep.subr.mxu0 0.0
      %1623 = vmatpush1.msra.mxu0 0.0
      %1624 = vmatprep.subr.mxu0 0.0
      %1625 = vmatpush1.msra.mxu0 0.0
      %1626 = vmatprep.subr.mxu0 0.0
      %1627 = vmatpush1.msra.mxu0 0.0
      %1628 = vmatprep.subr.mxu0 0.0
      %1629 = vmatpush1.msra.mxu0 0.0
      %1630 = vmatprep.subr.mxu0 0.0
      %1631 = vmatpush1.msra.mxu0 %v1518
      %1632 = vmatprep.subr.mxu0 0.0
      %1633 = vmatpush1.msra.mxu0 %v1517
      %1634 = vmatprep.subr.mxu0 0.0
      %1635 = vmatpush1.msra.mxu0 %v1516
      %1636 = vmatprep.subr.mxu0 0.0
      %1637 = vmatpush1.msra.mxu0 %v1515
      %1638 = vmatprep.subr.mxu0 0.0
      %1639 = vmatpush2.msra.mxu0 0.0
      %1640 = vmatprep.subr.mxu0 0.0
      %1641 = vmatpush2.msra.mxu0 0.0
      %1642 = vmatprep.subr.mxu0 0.0
      %1643 = vmatpush2.msra.mxu0 0.0
      %1644 = vmatprep.subr.mxu0 0.0
      %1645 = vmatpush2.msra.mxu0 0.0
      %1646 = vmatprep.subr.mxu0 0.0
      %1647 = vmatpush2.msra.mxu0 0.0
      %1648 = vmatprep.subr.mxu0 0.0
      %1649 = vmatpush2.msra.mxu0 0.0
      %1650 = vmatprep.subr.mxu0 0.0
      %1651 = vmatpush2.msra.mxu0 0.0
      %1652 = vmatprep.subr.mxu0 0.0
      %1653 = vmatpush2.msra.mxu0 0.0
      %1654 = vmatprep.subr.mxu0 0.0
      %1655 = vmatpush2.msra.mxu0 0.0
      %1656 = vmatprep.subr.mxu0 0.0
      %1657 = vmatpush2.msra.mxu0 0.0
      %1658 = vmatprep.subr.mxu0 0.0
      %1659 = vmatpush2.msra.mxu0 0.0
      %1660 = vmatprep.subr.mxu0 0.0
      %1661 = vmatpush2.msra.mxu0 0.0
      %1662 = vmatprep.subr.mxu0 0.0
      %1663 = vmatpush2.msra.mxu0 0.0
      %1664 = vmatprep.subr.mxu0 0.0
      %1665 = vmatpush2.msra.mxu0 0.0
      %1666 = vmatprep.subr.mxu0 0.0
      %1667 = vmatpush2.msra.mxu0 0.0
      %1668 = vmatprep.subr.mxu0 0.0
      %1669 = vmatpush2.msra.mxu0 0.0
      %1670 = vmatprep.mubr.f32.mxu0 0.0
      %1671 = vmatmul.mubr.f32.gmra.mxu0 %v1559
      %v1672 = vpop.f32.mrf.mxu0
      %v1673 = vadd.f32 %v1556, %v1672
      %v1674 = vpop.f32.mrf.mxu0
      %1675 = vmatprep.mubr.f32.mxu0 0.0
      %1676 = vmatmul.mubr.f32.gmra.mxu0 %v1562
      %v1677 = vpop.f32.mrf.mxu0
      %v1678 = vadd.f32 %v1556, %v1677
      %v1679 = vpop.f32.mrf.mxu0
      %1680 = vmatprep.mubr.f32.mxu0 0.0
      %1681 = vmatmul.mubr.f32.gmra.mxu0 %v1565
      %v1682 = vpop.f32.mrf.mxu0
      %v1683 = vadd.f32 %v1556, %v1682
      %v1684 = vpop.f32.mrf.mxu0
      %1685 = vmatprep.mubr.f32.mxu0 0.0
      %1686 = vmatmul.mubr.f32.gmra.mxu0 %v1568
      %v1687 = vpop.f32.mrf.mxu0
      %v1688 = vadd.f32 %v1556, %v1687
      %v1689 = vpop.f32.mrf.mxu0
      %1690 = vmatprep.mubr.f32.mxu0 0.0
      %1691 = vmatmul.mubr.f32.gmra.mxu0 %v1571
      %v1692 = vpop.f32.mrf.mxu0
      %v1693 = vadd.f32 %v1556, %v1692
      %v1694 = vpop.f32.mrf.mxu0
      %1695 = vmatprep.mubr.f32.mxu0 0.0
      %1696 = vmatmul.mubr.f32.gmra.mxu0 %v1574
      %v1697 = vpop.f32.mrf.mxu0
      %v1698 = vadd.f32 %v1556, %v1697
      %v1699 = vpop.f32.mrf.mxu0
      %1700 = vmatprep.mubr.f32.mxu0 0.0
      %1701 = vmatmul.mubr.f32.gmra.mxu0 %v1577
      %v1702 = vpop.f32.mrf.mxu0
      %v1703 = vadd.f32 %v1556, %v1702
      %v1704 = vpop.f32.mrf.mxu0
      %1705 = vmatprep.mubr.f32.mxu0 0.0
      %1706 = vmatmul.mubr.f32.gmra.mxu0 %v1580
      %v1707 = vpop.f32.mrf.mxu0
      %v1708 = vadd.f32 %v1556, %v1707
      %v1709 = vpop.f32.mrf.mxu0
      %1710 = vmatprep.mubr.f32.mxu0 0.0
      %1711 = vmatmul.mubr.f32.gmra.mxu0 %v1583
      %v1712 = vpop.f32.mrf.mxu0
      %v1713 = vadd.f32 %v1556, %v1712
      %v1714 = vpop.f32.mrf.mxu0
      %1715 = vmatprep.mubr.f32.mxu0 0.0
      %1716 = vmatmul.mubr.f32.gmra.mxu0 %v1586
      %v1717 = vpop.f32.mrf.mxu0
      %v1718 = vadd.f32 %v1556, %v1717
      %v1719 = vpop.f32.mrf.mxu0
      %1720 = vmatprep.mubr.f32.mxu0 0.0
      %1721 = vmatmul.mubr.f32.gmra.mxu0 %v1589
      %v1722 = vpop.f32.mrf.mxu0
      %v1723 = vadd.f32 %v1556, %v1722
      %v1724 = vpop.f32.mrf.mxu0
      %1725 = vmatprep.mubr.f32.mxu0 0.0
      %1726 = vmatmul.mubr.f32.gmra.mxu0 %v1592
      %v1727 = vpop.f32.mrf.mxu0
      %v1728 = vadd.f32 %v1556, %v1727
      %v1729 = vpop.f32.mrf.mxu0
      %1730 = vmatprep.mubr.f32.mxu0 0.0
      %1731 = vmatmul.mubr.f32.gmra.mxu0 %v1595
      %v1732 = vpop.f32.mrf.mxu0
      %v1733 = vadd.f32 %v1556, %v1732
      %v1734 = vpop.f32.mrf.mxu0
      %1735 = vmatprep.mubr.f32.mxu0 0.0
      %1736 = vmatmul.mubr.f32.gmra.mxu0 %v1598
      %v1737 = vpop.f32.mrf.mxu0
      %v1738 = vadd.f32 %v1556, %v1737
      %v1739 = vpop.f32.mrf.mxu0
      %1740 = vmatprep.mubr.f32.mxu0 0.0
      %1741 = vmatmul.mubr.f32.gmra.mxu0 %v1601
      %v1742 = vpop.f32.mrf.mxu0
      %v1743 = vadd.f32 %v1556, %v1742
      %v1744 = vpop.f32.mrf.mxu0
      %1745 = vmatprep.mubr.f32.mxu0 0.0
      %1746 = vmatmul.mubr.f32.gmra.mxu0 %v1604
      %v1747 = vpop.f32.mrf.mxu0
      %v1748 = vadd.f32 %v1556, %v1747
      %v1749 = vpop.f32.mrf.mxu0
      %1750 = vdwg.mxu0
      %vm1751 = vcmask 64512
      %1752 = vst.msk [vmem:[%s280] sm:$0xff] %vm1751, %v1673
      %1753 = vst.msk [vmem:[%s280 + $0x8] sm:$0xff] %vm1751, %v1678
      %1754 = vst.msk [vmem:[%s280 + $0x10] sm:$0xff] %vm1751, %v1683
      %1755 = vst.msk [vmem:[%s280 + $0x18] sm:$0xff] %vm1751, %v1688
      %1756 = vst.msk [vmem:[%s280 + $0x20] sm:$0xff] %vm1751, %v1693
      %1757 = vst.msk [vmem:[%s280 + $0x28] sm:$0xff] %vm1751, %v1698
      %1758 = vst.msk [vmem:[%s280 + $0x30] sm:$0xff] %vm1751, %v1703
      %1759 = vst.msk [vmem:[%s280 + $0x38] sm:$0xff] %vm1751, %v1708
      %1760 = vst.msk [vmem:[%s280 + $0x40] sm:$0xff] %vm1751, %v1713
      %1761 = vst.msk [vmem:[%s280 + $0x48] sm:$0xff] %vm1751, %v1718
      %1762 = vst.msk [vmem:[%s280 + $0x50] sm:$0xff] %vm1751, %v1723
      %1763 = vst.msk [vmem:[%s280 + $0x58] sm:$0xff] %vm1751, %v1728
      %1764 = vst.msk [vmem:[%s280 + $0x60] sm:$0xff] %vm1751, %v1733
      %1765 = vst.msk [vmem:[%s280 + $0x68] sm:$0xff] %vm1751, %v1738
      %1766 = vst.msk [vmem:[%s280 + $0x70] sm:$0xff] %vm1751, %v1743
      %1767 = vst.msk [vmem:[%s280 + $0x78] sm:$0xff] %vm1751, %v1748
      %s1768 = smul.u32 16, %s18
      %p1769 = scmp.lt.s32.totalorder %s1768, 31
      %s1770 = scalar_select %p1769, %s1768, 31
      %s1771 = smul.addr %s1770, 8
      %s1772 = scalar_lea.vmem %s7, %s1771
      // Predicated region
      $region49: #{tpu_custom_call.1} parent=47 // pred_check
        %p1773 = pneg %p188
      $region50: #{tpu_custom_call.1} parent=47 // pred_check_branch
        %1775 = sbr.rel (%p1773) target = $region52
      $region51: #{tpu_custom_call.1} parent=47 // pred_region
        %s1776 = smul.u32 16, %s18
      $region52: #{tpu_custom_call.1} parent=47 // pred_fallthru
        _
    $region48: #{tpu_custom_call.1} parent=5 // pred_fallthru
      _
    %p1777 = scmp.le.s32.totalorder 2, %s13
    // Predicated region
    $region53: #{tpu_custom_call.1} parent=5 // pred_check
      %p1778 = pneg %p1777
    $region54: #{tpu_custom_call.1} parent=5 // pred_check_branch
      %1780 = sbr.rel (%p1778) target = $region56
    $region55: #{tpu_custom_call.1} parent=5 // pred_region
      %s1781 = ssub.s32 %s13, 2
      // Predicated region
      $region57: #{tpu_custom_call.1} parent=55 // pred_check
        %p1782 = pneg %p194
      $region58: #{tpu_custom_call.1} parent=55 // pred_check_branch
        %1784 = sbr.rel (%p1782) target = $region60
      $region59: #{tpu_custom_call.1} parent=55 // pred_region
        %s1785 = smul.u32 16, %s19
        %p1786 = scmp.lt.s32.totalorder %s1785, 31
        %s1787 = scalar_select %p1786, %s1785, 31
        %s1788 = smul.addr %s1787, 8
        %s1789 = scalar_lea.vmem %s7, %s1788
      $region60: #{tpu_custom_call.1} parent=55 // pred_fallthru
        _
    $region56: #{tpu_custom_call.1} parent=5 // pred_fallthru
      _
  $region6: #{tpu_custom_call.1} parent=0 // loop_footer
    %s17 = sadd.s32 1, %s13
  $region7: #{tpu_custom_call.1} parent=0 // loop_footer_branch
    %12 = sbr.rel target = $region3
  $region8: #{tpu_custom_call.1} parent=0 // loop_exit
    _

</llo_original>
